<compile_context>
chip_gen: v6e
topology: v6e:2x2x1
jax: 0.10.0
libtpu: 0.0.40
codegen_flags: <defaults>
</compile_context>

<pallas_src>
import jax
import jax.numpy as jnp
from jax.experimental import pallas as pl
from jax.experimental.pallas import tpu as pltpu

HIDDEN = 1000        # fixed by the module: nn.Linear(in_channels, 1000)
HIDDEN_PAD = 1024    # zero-padded to a lane-aligned multiple of 128 for the MXU


# ----------------------------------------------------------------------------
# Hardware / budget helpers
# ----------------------------------------------------------------------------
def _round_up(v, m):
    return (v + m - 1) // m * m


def _vmem_capacity_bytes():
    try:
        cap = int(pltpu.get_tpu_info().vmem_capacity_bytes)
        if cap > 0:
            return cap
    except Exception:
        pass
    try:
        kind = (getattr(jax.devices()[0], "device_kind", "") or "").lower()
        if "v7" in kind:
            return 64 * 1024 * 1024
    except Exception:
        pass
    return 128 * 1024 * 1024   # v5e / v6e physical VMEM


def _num_tensorcores():
    try:
        kind = (getattr(jax.devices()[0], "device_kind", "") or "").lower()
    except Exception:
        return 1
    # v7x has 2 TensorCores per chip; v3/v4 megacore also shard "parallel" axes.
    return 2 if any(t in kind for t in ("v7", "v4", "v3")) else 1


def _x_block_vmem_bytes(b_tile, c, hw):
    # VMEM pads the second-minor dim to 8 sublanes and the minor dim to 128 lanes.
    return b_tile * _round_up(c, 8) * _round_up(hw, 128) * 4


def _weights_vmem_bytes(c, out):
    w_fc = _round_up(c, 8) * HIDDEN_PAD * 4
    w_cv = HIDDEN_PAD * _round_up(out, 128) * 4
    # Conservatively assume default 2-deep buffering even though we request
    # pl.Buffered(1) for the (never re-fetched) weights.
    return 2 * (w_fc + w_cv)


def _route1_block_vmem_bytes(b_tile, out):
    return 2 * b_tile * 8 * _round_up(out, 128) * 4


def _pick_batch_tile(n, c, hw, out, budget_bytes, num_cores):
    """Largest divisor of n whose *full* kernel footprint (2x-buffered x block,
    2x-buffered y block, weights, route1 block, all with (8,128) padding) fits
    the budget.  Returns None if not even b_tile=1 fits (caller falls back)."""
    fixed = _weights_vmem_bytes(c, out)

    def footprint(bt):
        return (fixed
                + 4 * _x_block_vmem_bytes(bt, c, hw)      # x + y, double-buffered
                + _route1_block_vmem_bytes(bt, out))

    fitting = [bt for bt in range(1, n + 1)
               if n % bt == 0 and footprint(bt) <= budget_bytes]
    if not fitting:
        return None
    if num_cores <= 1:
        # single TensorCore: biggest tile wins (amortizes ~0.35 us/step).
        return max(fitting)
    # Multi-TensorCore: prefer step counts that split evenly across the cores,
    # and >= 2 steps per core so prefetch/writeback overlaps on each core.
    even = [bt for bt in fitting if (n // bt) % num_cores == 0]
    even2 = [bt for bt in even if (n // bt) >= 2 * num_cores]
    for cand in (even2, even, fitting):
        if cand:
            return max(cand)
    return max(fitting)


# ----------------------------------------------------------------------------
# Fused single-pass kernel (default path)
# ----------------------------------------------------------------------------
def fc_attention_fused_kernel(x_ref, w_fc_ref, w_conv_ref, route1_ref, y_ref):
    # x_ref:      (B_TILE, C, HW)   HW in lanes, C in sublanes
    # w_fc_ref:   (C, HIDDEN_PAD)   Linear weight, pre-transposed + zero-padded
    # w_conv_ref: (HIDDEN_PAD, OUT) 1x1 conv weight, pre-transposed + zero-padded
    # route1_ref: (B_TILE, 1, OUT)
    # y_ref:      (B_TILE, C, HW)
    x = x_ref[...]

    # AdaptiveAvgPool2d(1): mean over spatial positions (cross-lane XLU reduce).
    pooled = jnp.mean(x, axis=-1)                                           # (B, C)

    # Linear(C, 1000, bias=False); padded columns of w_fc are zero.
    h = jnp.dot(pooled, w_fc_ref[...], preferred_element_type=jnp.float32)  # (B, 1024)

    # Conv2d(1000, OUT, 1, bias=False) on a 1x1 map == matmul; padded rows zero.
    g = jnp.dot(h, w_conv_ref[...], preferred_element_type=jnp.float32)     # (B, OUT)
    g = jnp.maximum(g, 0.0)                                                 # ReLU

    route1_ref[...] = g[:, None, :]
    # y = residual * route1: per-(batch, channel) scalar broadcast over lanes.
    y_ref[...] = x * g[:, :, None]


def _fused_call(x_flat, w_fc_tp, w_conv_tp, b_tile, vmem_limit, donate_x):
    N, C, HW = x_flat.shape
    OUT = w_conv_tp.shape[1]
    grid = (N // b_tile,)

    flops = int(2 * N * C * HIDDEN_PAD + 2 * N * HIDDEN_PAD * OUT + 2 * N * C * HW)
    bytes_accessed = int(4 * (2 * N * C * HW + C * HIDDEN_PAD + HIDDEN_PAD * OUT + N * OUT))

    def build(single_buffer_weights):
        if single_buffer_weights:
            # Constant index maps -> never re-fetched; a single buffer suffices.
            w_fc_spec = pl.BlockSpec((C, HIDDEN_PAD), lambda i: (0, 0),
                                     pipeline_mode=pl.Buffered(1))
            w_cv_spec = pl.BlockSpec((HIDDEN_PAD, OUT), lambda i: (0, 0),
                                     pipeline_mode=pl.Buffered(1))
        else:
            w_fc_spec = pl.BlockSpec((C, HIDDEN_PAD), lambda i: (0, 0))
            w_cv_spec = pl.BlockSpec((HIDDEN_PAD, OUT), lambda i: (0, 0))
        return pl.pallas_call(
            fc_attention_fused_kernel,
            out_shape=(
                jax.ShapeDtypeStruct((N, 1, OUT), jnp.float32),
                jax.ShapeDtypeStruct((N, C, HW), jnp.float32),
            ),
            grid=grid,
            in_specs=[
                pl.BlockSpec((b_tile, C, HW), lambda i: (i, 0, 0)),   # x batch tile
                w_fc_spec,
                w_cv_spec,
            ],
            out_specs=(
                pl.BlockSpec((b_tile, 1, OUT), lambda i: (i, 0, 0)),  # route1 tile
                pl.BlockSpec((b_tile, C, HW), lambda i: (i, 0, 0)),   # y batch tile
            ),
            compiler_params=pltpu.CompilerParams(
                dimension_semantics=("parallel",),
                vmem_limit_bytes=vmem_limit),
            cost_estimate=pl.CostEstimate(
                flops=flops, transcendentals=0, bytes_accessed=bytes_accessed),
            input_output_aliases=({0: 1} if donate_x else {}),
        )

    try:
        return build(True)(x_flat, w_fc_tp, w_conv_tp)
    except Exception:
        # pipeline_mode=pl.Buffered(1) unsupported on this jax build; the VMEM
        # budget already accounted for 2x-buffered weights, so this is safe.
        return build(False)(x_flat, w_fc_tp, w_conv_tp)


# ----------------------------------------------------------------------------
# Two-phase fallback (gate in XLA, streaming gate-multiply in Pallas)
# ----------------------------------------------------------------------------
def _gate_mul_kernel(x_ref, g_ref, y_ref):
    # x_ref: (R, HWT); g_ref: (R, 1); y_ref: (R, HWT)
    y_ref[...] = x_ref[...] * g_ref[...]


def _pick_stream_tiles(rows, hw, budget_bytes):
    hw_cands = [t for t in range(1, hw + 1)
                if hw % t == 0 and (t % 128 == 0 or t == hw)]
    row_cands = [r for r in range(1, rows + 1)
                 if rows % r == 0 and (r % 8 == 0 or r == rows)]

    def footprint(r, t):
        stream = 4 * r * _round_up(t, 128) * 4       # x + y blocks, double-buffered
        gate = 2 * _round_up(r, 8) * 128 * 4         # (r, 1) gate block, double-buffered
        return stream + gate

    fitting = [(r, t) for r in row_cands for t in hw_cands
               if footprint(r, t) <= budget_bytes]
    if fitting:
        # Largest block wins; prefer the wider (lane-dense) tile at equal area.
        return max(fitting, key=lambda rt: (rt[0] * rt[1], rt[1]))
    # Nothing fits the conservative budget: take the smallest legal block and
    # rely on the explicit vmem_limit headroom.
    return min(((r, t) for r in row_cands for t in hw_cands),
               key=lambda rt: rt[0] * rt[1])


def _two_phase_forward(x_flat, w_fc_tp, w_conv_tp, vmem_limit, budget):
    N, C, HW = x_flat.shape
    # Phase 1 (tiny, O(N*C) values): gate in plain XLA.
    pooled = jnp.mean(x_flat, axis=-1)                                       # (N, C)
    g = jnp.maximum(jnp.dot(jnp.dot(pooled, w_fc_tp), w_conv_tp), 0.0)       # (N, OUT)

    rows = N * C
    r_tile, hw_tile = _pick_stream_tiles(rows, HW, budget)
    x2d = x_flat.reshape(rows, HW)
    g_rows = g.reshape(rows, 1)      # valid because OUT == C (asserted by caller)

    y2d = pl.pallas_call(
        _gate_mul_kernel,
        out_shape=jax.ShapeDtypeStruct((rows, HW), jnp.float32),
        grid=(rows // r_tile, HW // hw_tile),
        in_specs=[
            pl.BlockSpec((r_tile, hw_tile), lambda i, j: (i, j)),
            pl.BlockSpec((r_tile, 1), lambda i, j: (i, 0)),
        ],
        out_specs=pl.BlockSpec((r_tile, hw_tile), lambda i, j: (i, j)),
        compiler_params=pltpu.CompilerParams(
            dimension_semantics=("parallel", "parallel"),
            vmem_limit_bytes=vmem_limit),
        cost_estimate=pl.CostEstimate(
            flops=int(rows * HW), transcendentals=0,
            bytes_accessed=int(4 * (2 * rows * HW + rows))),
    )(x2d, g_rows)

    route1 = g[:, :, None, None]
    return route1, y2d.reshape(N, C, HW)


# ----------------------------------------------------------------------------
# Public API
# ----------------------------------------------------------------------------
def prepare_fc_attention_params(w_fc, w_conv):
    """One-time glue (hoisted out of the per-call path): transpose the torch
    weight layouts to matmul-friendly ones and zero-pad HIDDEN=1000 -> 1024 so
    both MXU matmuls are lane-aligned.  Zero padding does not change the math.

    w_fc   : (1000, C)            torch nn.Linear weight layout
    w_conv : (OUT, 1000, 1, 1)    torch nn.Conv2d weight layout
    returns: (w_fc_tp (C, 1024), w_conv_tp (1024, OUT))
    """
    assert w_fc.shape[0] == HIDDEN
    OUT = w_conv.shape[0]
    w_fc_t = jnp.transpose(w_fc, (1, 0)).astype(jnp.float32)                        # (C, 1000)
    w_conv_t = jnp.transpose(w_conv.reshape(OUT, HIDDEN), (1, 0)).astype(jnp.float32)  # (1000, OUT)
    pad = HIDDEN_PAD - HIDDEN
    w_fc_tp = jnp.pad(w_fc_t, ((0, 0), (0, pad)))
    w_conv_tp = jnp.pad(w_conv_t, ((0, pad), (0, 0)))
    return w_fc_tp, w_conv_tp


def fc_attention_forward(x_nchw, w_fc_tp, w_conv_tp, *, donate_x=False):
    """
    x_nchw   : (N, C, H, W) float32    PyTorch NCHW input
    w_fc_tp  : (C, 1024)               prepared (transposed + padded) Linear weight
    w_conv_tp: (1024, OUT)             prepared (transposed + padded) 1x1 conv weight
    donate_x : alias x's HBM buffer to y (only if the caller no longer needs x)
    returns  : (route1 (N, OUT, 1, 1), y (N, C, H, W))
    """
    N, C, H, W = x_nchw.shape
    assert w_fc_tp.shape == (C, HIDDEN_PAD), "pass weights through prepare_fc_attention_params"
    OUT = w_conv_tp.shape[1]
    assert OUT == C, "residual * route1 broadcast requires out_channels == in_channels"
    HW = H * W

    # Free, contiguous reshape: HW in lanes, C in sublanes — no transposes of x/y.
    # TODO(synk): for SE stages with HW < 128 the last dim pads to 128 lanes in
    # VMEM (masked vst); a lane-dense (N, C*HW) variant with a pre-expanded gate
    # would trade +1x x-read HBM traffic for unmasked stores — not implemented.
    x_flat = x_nchw.reshape(N, C, HW)

    capacity = _vmem_capacity_bytes()
    vmem_limit = int(capacity * 3 // 4)     # v7x: ~48 MiB; v5e/v6e: ~96 MiB
    budget = int(vmem_limit * 4 // 5)       # leave headroom for compiler scratch
    num_cores = _num_tensorcores()

    b_tile = _pick_batch_tile(N, C, HW, OUT, budget, num_cores)
    if b_tile is not None:
        route1_3d, y_flat = _fused_call(x_flat, w_fc_tp, w_conv_tp, b_tile,
                                        vmem_limit, donate_x)
        route1 = route1_3d.reshape(N, OUT)[:, :, None, None]
        return route1, y_flat.reshape(N, C, H, W)

    # One batch's (C, HW) slab does not fit the VMEM budget: two-phase fallback
    # (gate via tiny XLA matmuls + pure streaming Pallas kernel; ~1.5x HBM traffic).
    route1, y_flat = _two_phase_forward(x_flat, w_fc_tp, w_conv_tp, vmem_limit, budget)
    return route1, y_flat.reshape(N, C, H, W)


def fc_attention_reference(x, w_fc, w_conv):
    N, C, H, W = x.shape
    OUT = w_conv.shape[0]
    pooled = jnp.mean(x, axis=(2, 3))                              # (N, C)
    h = pooled @ w_fc.T                                            # (N, 1000)
    r = jnp.maximum(h @ w_conv.reshape(OUT, HIDDEN).T, 0.0)        # (N, OUT)
    route1 = r[:, :, None, None]
    return route1, x * route1


if __name__ == "__main__":
    key = jax.random.PRNGKey(0)
    k1, k2, k3 = jax.random.split(key, 3)

    N, C, H, W = 2, 4, 16, 16
    OUT = C  # out_channels must equal in_channels for the residual multiply

    x = jax.random.normal(k1, (N, C, H, W), dtype=jnp.float32)
    # Deterministic synthetic parameters (uniform, roughly PyTorch fan-in scale).
    bound_fc = 1.0 / float(C) ** 0.5
    w_fc = jax.random.uniform(k2, (HIDDEN, C), jnp.float32, -bound_fc, bound_fc)
    bound_cv = 1.0 / float(HIDDEN) ** 0.5
    w_conv = jax.random.uniform(k3, (OUT, HIDDEN, 1, 1), jnp.float32, -bound_cv, bound_cv)

    w_fc_tp, w_conv_tp = prepare_fc_attention_params(w_fc, w_conv)
    route1, y = fc_attention_forward(x, w_fc_tp, w_conv_tp)
    jax.block_until_ready((route1, y))

    route1_ref, y_ref = fc_attention_reference(x, w_fc, w_conv)
    assert route1.shape == (N, OUT, 1, 1) and y.shape == (N, C, H, W)
    assert jnp.allclose(route1, route1_ref, atol=1e-3, rtol=1e-3)
    assert jnp.allclose(y, y_ref, atol=1e-3, rtol=1e-3)

    print("KERNEL_OK")
</pallas_src>

<mosaic_0001>
module attributes {stable_mosaic.version = 11 : i64} {
  func.func @fc_attention_fused_kernel(%arg0: i32, %arg1: memref<2x4x256xf32, #tpu.memory_space<vmem>>, %arg2: memref<4x1024xf32, #tpu.memory_space<vmem>>, %arg3: memref<1024x4xf32, #tpu.memory_space<vmem>>, %arg4: memref<2x1x4xf32, #tpu.memory_space<vmem>>, %arg5: memref<2x4x256xf32, #tpu.memory_space<vmem>>) attributes {dimension_semantics = [#tpu.dimension_semantics<parallel>], iteration_bounds = array<i64: 1>, scalar_prefetch = 0 : i64, scratch_operands = 0 : i64, tpu.core_type = #tpu.core_type<tc>, window_params = [{transform_indices = @transform_0, window_bounds = array<i64: 2, 4, 256>}, {pipeline_mode = #tpu.pipeline_mode<synchronous>, transform_indices = @transform_1, window_bounds = array<i64: 4, 1024>}, {pipeline_mode = #tpu.pipeline_mode<synchronous>, transform_indices = @transform_2, window_bounds = array<i64: 1024, 4>}, {transform_indices = @transform_3, window_bounds = array<i64: 2, 1, 4>}, {transform_indices = @transform_4, window_bounds = array<i64: 2, 4, 256>}]} {
    %c0 = arith.constant 0 : index
    %c0_0 = arith.constant 0 : index
    %c0_1 = arith.constant 0 : index
    %0 = vector.load %arg1[%c0, %c0_0, %c0_1] : memref<2x4x256xf32, #tpu.memory_space<vmem>>, vector<2x4x256xf32>
    %cst = arith.constant dense<0.000000e+00> : vector<2x4xf32>
    %1 = vector.multi_reduction <add>, %0, %cst [2] : vector<2x4x256xf32> to vector<2x4xf32>
    %cst_2 = arith.constant 2.560000e+02 : f32
    %2 = vector.broadcast %cst_2 : f32 to vector<2x4xf32>
    %3 = arith.divf %1, %2 : vector<2x4xf32>
    %c0_3 = arith.constant 0 : index
    %c0_4 = arith.constant 0 : index
    %4 = vector.load %arg2[%c0_3, %c0_4] : memref<4x1024xf32, #tpu.memory_space<vmem>>, vector<4x1024xf32>
    %cst_5 = arith.constant dense<0.000000e+00> : vector<2x1024xf32>
    %5 = tpu.matmul %3, %4, %cst_5 {dimension_numbers = #tpu.dot_dimension_numbers<[1], [0], [0], [1], [0, 0, 1, 1], [], []>} : vector<2x4xf32>, vector<4x1024xf32>, vector<2x1024xf32> -> vector<2x1024xf32>
    %c0_6 = arith.constant 0 : index
    %c0_7 = arith.constant 0 : index
    %6 = vector.load %arg3[%c0_6, %c0_7] : memref<1024x4xf32, #tpu.memory_space<vmem>>, vector<1024x4xf32>
    %cst_8 = arith.constant dense<0.000000e+00> : vector<2x4xf32>
    %7 = tpu.matmul %5, %6, %cst_8 {dimension_numbers = #tpu.dot_dimension_numbers<[1], [0], [0], [1], [0, 0, 1, 1], [], []>} : vector<2x1024xf32>, vector<1024x4xf32>, vector<2x4xf32> -> vector<2x4xf32>
    %cst_9 = arith.constant 0.000000e+00 : f32
    %8 = vector.broadcast %cst_9 : f32 to vector<2x4xf32>
    %9 = arith.maximumf %7, %8 : vector<2x4xf32>
    %10 = vector.shape_cast %9 : vector<2x4xf32> to vector<2x1x4xf32>
    %c0_10 = arith.constant 0 : index
    %c0_11 = arith.constant 0 : index
    %c0_12 = arith.constant 0 : index
    %11 = vector.load %arg4[%c0_10, %c0_11, %c0_12] : memref<2x1x4xf32, #tpu.memory_space<vmem>>, vector<2x1x4xf32>
    tpu.vector_store %arg4[%c0_10, %c0_11, %c0_12], %10 {strides = array<i32>} : memref<2x1x4xf32, #tpu.memory_space<vmem>>, vector<2x1x4xf32>,
    %12 = vector.shape_cast %9 : vector<2x4xf32> to vector<2x4x1xf32>
    %13 = vector.broadcast %12 : vector<2x4x1xf32> to vector<2x4x256xf32>
    %14 = arith.mulf %0, %13 : vector<2x4x256xf32>
    %c0_13 = arith.constant 0 : index
    %c0_14 = arith.constant 0 : index
    %c0_15 = arith.constant 0 : index
    %15 = vector.load %arg5[%c0_13, %c0_14, %c0_15] : memref<2x4x256xf32, #tpu.memory_space<vmem>>, vector<2x4x256xf32>
    tpu.vector_store %arg5[%c0_13, %c0_14, %c0_15], %14 {strides = array<i32>} : memref<2x4x256xf32, #tpu.memory_space<vmem>>, vector<2x4x256xf32>,
    return
  }
  func.func @transform_0(%arg0: i32) -> (i32, i32, i32) {
    %c0_i32 = arith.constant 0 : i32
    %c0_i32_0 = arith.constant 0 : i32
    %c0_i32_1 = arith.constant 0 : i32
    return %arg0, %c0_i32, %c0_i32_0 : i32, i32, i32
  }
  func.func @transform_1(%arg0: i32) -> (i32, i32) {
    %c0_i32 = arith.constant 0 : i32
    %c0_i32_0 = arith.constant 0 : i32
    %c0_i32_1 = arith.constant 0 : i32
    return %c0_i32, %c0_i32_0 : i32, i32
  }
  func.func @transform_2(%arg0: i32) -> (i32, i32) {
    %c0_i32 = arith.constant 0 : i32
    %c0_i32_0 = arith.constant 0 : i32
    %c0_i32_1 = arith.constant 0 : i32
    return %c0_i32, %c0_i32_0 : i32, i32
  }
  func.func @transform_3(%arg0: i32) -> (i32, i32, i32) {
    %c0_i32 = arith.constant 0 : i32
    %c0_i32_0 = arith.constant 0 : i32
    %c0_i32_1 = arith.constant 0 : i32
    return %arg0, %c0_i32, %c0_i32_0 : i32, i32, i32
  }
  func.func @transform_4(%arg0: i32) -> (i32, i32, i32) {
    %c0_i32 = arith.constant 0 : i32
    %c0_i32_0 = arith.constant 0 : i32
    %c0_i32_1 = arith.constant 0 : i32
    return %arg0, %c0_i32, %c0_i32_0 : i32, i32, i32
  }
}

module attributes {stable_mosaic.version = 11 : i64} {
  func.func @fc_attention_fused_kernel(%arg0: i32, %arg1: memref<2x4x256xf32, #tpu.memory_space<vmem>>, %arg2: memref<4x1024xf32, #tpu.memory_space<vmem>>, %arg3: memref<1024x4xf32, #tpu.memory_space<vmem>>, %arg4: memref<2x1x4xf32, #tpu.memory_space<vmem>>, %arg5: memref<2x4x256xf32, #tpu.memory_space<vmem>>) attributes {dimension_semantics = [#tpu.dimension_semantics<parallel>], iteration_bounds = array<i64: 1>, scalar_prefetch = 0 : i64, scratch_operands = 0 : i64, tpu.core_type = #tpu.core_type<tc>, window_params = [{transform_indices = @transform_0, window_bounds = array<i64: 2, 4, 256>}, {pipeline_mode = #tpu.pipeline_mode<synchronous>, transform_indices = @transform_1, window_bounds = array<i64: 4, 1024>}, {pipeline_mode = #tpu.pipeline_mode<synchronous>, transform_indices = @transform_2, window_bounds = array<i64: 1024, 4>}, {transform_indices = @transform_3, window_bounds = array<i64: 2, 1, 4>}, {transform_indices = @transform_4, window_bounds = array<i64: 2, 4, 256>}]} {
    %c0 = arith.constant 0 : index
    %c0_0 = arith.constant 0 : index
    %c0_1 = arith.constant 0 : index
    %0 = vector.load %arg1[%c0, %c0_0, %c0_1] : memref<2x4x256xf32, #tpu.memory_space<vmem>>, vector<2x4x256xf32>
    %cst = arith.constant dense<0.000000e+00> : vector<2x4xf32>
    %1 = vector.multi_reduction <add>, %0, %cst [2] : vector<2x4x256xf32> to vector<2x4xf32>
    %cst_2 = arith.constant 2.560000e+02 : f32
    %2 = vector.broadcast %cst_2 : f32 to vector<2x4xf32>
    %3 = arith.divf %1, %2 : vector<2x4xf32>
    %c0_3 = arith.constant 0 : index
    %c0_4 = arith.constant 0 : index
    %4 = vector.load %arg2[%c0_3, %c0_4] : memref<4x1024xf32, #tpu.memory_space<vmem>>, vector<4x1024xf32>
    %cst_5 = arith.constant dense<0.000000e+00> : vector<2x1024xf32>
    %5 = tpu.matmul %3, %4, %cst_5 {dimension_numbers = #tpu.dot_dimension_numbers<[1], [0], [0], [1], [0, 0, 1, 1], [], []>} : vector<2x4xf32>, vector<4x1024xf32>, vector<2x1024xf32> -> vector<2x1024xf32>
    %c0_6 = arith.constant 0 : index
    %c0_7 = arith.constant 0 : index
    %6 = vector.load %arg3[%c0_6, %c0_7] : memref<1024x4xf32, #tpu.memory_space<vmem>>, vector<1024x4xf32>
    %cst_8 = arith.constant dense<0.000000e+00> : vector<2x4xf32>
    %7 = tpu.matmul %5, %6, %cst_8 {dimension_numbers = #tpu.dot_dimension_numbers<[1], [0], [0], [1], [0, 0, 1, 1], [], []>} : vector<2x1024xf32>, vector<1024x4xf32>, vector<2x4xf32> -> vector<2x4xf32>
    %cst_9 = arith.constant 0.000000e+00 : f32
    %8 = vector.broadcast %cst_9 : f32 to vector<2x4xf32>
    %9 = arith.maximumf %7, %8 : vector<2x4xf32>
    %10 = vector.shape_cast %9 : vector<2x4xf32> to vector<2x1x4xf32>
    %c0_10 = arith.constant 0 : index
    %c0_11 = arith.constant 0 : index
    %c0_12 = arith.constant 0 : index
    %11 = vector.load %arg4[%c0_10, %c0_11, %c0_12] : memref<2x1x4xf32, #tpu.memory_space<vmem>>, vector<2x1x4xf32>
    tpu.vector_store %arg4[%c0_10, %c0_11, %c0_12], %10 {strides = array<i32>} : memref<2x1x4xf32, #tpu.memory_space<vmem>>, vector<2x1x4xf32>,
    %12 = vector.shape_cast %9 : vector<2x4xf32> to vector<2x4x1xf32>
    %13 = vector.broadcast %12 : vector<2x4x1xf32> to vector<2x4x256xf32>
    %14 = arith.mulf %0, %13 : vector<2x4x256xf32>
    %c0_13 = arith.constant 0 : index
    %c0_14 = arith.constant 0 : index
    %c0_15 = arith.constant 0 : index
    %15 = vector.load %arg5[%c0_13, %c0_14, %c0_15] : memref<2x4x256xf32, #tpu.memory_space<vmem>>, vector<2x4x256xf32>
    tpu.vector_store %arg5[%c0_13, %c0_14, %c0_15], %14 {strides = array<i32>} : memref<2x4x256xf32, #tpu.memory_space<vmem>>, vector<2x4x256xf32>,
    return
  }
  func.func @transform_0(%arg0: i32) -> (i32, i32, i32) {
    %c0_i32 = arith.constant 0 : i32
    %c0_i32_0 = arith.constant 0 : i32
    %c0_i32_1 = arith.constant 0 : i32
    return %arg0, %c0_i32, %c0_i32_0 : i32, i32, i32
  }
  func.func @transform_1(%arg0: i32) -> (i32, i32) {
    %c0_i32 = arith.constant 0 : i32
    %c0_i32_0 = arith.constant 0 : i32
    %c0_i32_1 = arith.constant 0 : i32
    return %c0_i32, %c0_i32_0 : i32, i32
  }
  func.func @transform_2(%arg0: i32) -> (i32, i32) {
    %c0_i32 = arith.constant 0 : i32
    %c0_i32_0 = arith.constant 0 : i32
    %c0_i32_1 = arith.constant 0 : i32
    return %c0_i32, %c0_i32_0 : i32, i32
  }
  func.func @transform_3(%arg0: i32) -> (i32, i32, i32) {
    %c0_i32 = arith.constant 0 : i32
    %c0_i32_0 = arith.constant 0 : i32
    %c0_i32_1 = arith.constant 0 : i32
    return %arg0, %c0_i32, %c0_i32_0 : i32, i32, i32
  }
  func.func @transform_4(%arg0: i32) -> (i32, i32, i32) {
    %c0_i32 = arith.constant 0 : i32
    %c0_i32_0 = arith.constant 0 : i32
    %c0_i32_1 = arith.constant 0 : i32
    return %arg0, %c0_i32, %c0_i32_0 : i32, i32, i32
  }
}

</mosaic_0001>

<llo_original>
// kernel: tpu_custom_call.1
$region0: #{tpu_custom_call.1}
  #allocation0 [shape = 'u32[]', space=smem, size = 0x4, offset = 0x4, fixed_abs, tag = 'smem constant byte address 0x4 - core index']
  #allocation1 [shape = 'u32[144,128]{1,0:T(1,128)}', space=vmem, size = 0x12000, scoped, tag = 'internal scratch']
  %s0 = inlined_call_operand.vmem [shape: f32[2,4,256], index: 0, kind: input, shape index: {}]
  %s1 = inlined_call_operand.vmem [shape: f32[4,1024], index: 1, kind: input, shape index: {}]
  %s2 = inlined_call_operand.vmem [shape: f32[1024,4], index: 2, kind: input, shape index: {}]
  %s3 = inlined_call_operand.hbm [shape: f32[2,1,4], index: 3, kind: output, shape index: {0}]
  %s4 = inlined_call_operand.hbm [shape: f32[2,4,256], index: 4, kind: output, shape index: {1}]
  %5 = xla_tuple %s3, %s4
  %s6 = sld [smem:[#allocation0]]
  $region30: #{tpu_custom_call.1} parent=0
    _
  %s8 = ssub.s32 1, %s6
  %s9 = scalar_select 0, %s8, %s6
  $region1: #{tpu_custom_call.1} parent=0
    #allocation2 [shape = 'u8[1024]{0}', space=vmem, size = 0x400, scoped, tag = 'output window, operand 0, single buffered']
    #allocation3 [shape = 's32[1]{0}', space=sflag, size = 0x4, scoped, tag = 'scoped memory for tpu_custom_call.1']
    #allocation4 [shape = 'u8[8192]{0}', space=vmem, size = 0x2000, scoped, tag = 'output window, operand 1, single buffered']
    #allocation5 [shape = 's32[1]{0}', space=sflag, size = 0x4, scoped, tag = 'scoped memory for tpu_custom_call.1']
    %10 = vsyncpa [#allocation3], 0
    %11 = vsyncpa [#allocation5], 0
    // Predicated region
    $region2: #{tpu_custom_call.1} parent=1 // pred_check
      _
    $region3: #{tpu_custom_call.1} parent=1 // pred_check_branch
      %13 = sbr.rel (0) target = $region5
    $region4: #{tpu_custom_call.1} parent=1 // pred_region
      _
    $region5: #{tpu_custom_call.1} parent=1 // pred_fallthru
      _
    // Predicated region
    $region6: #{tpu_custom_call.1} parent=1 // pred_check
      _
    $region7: #{tpu_custom_call.1} parent=1 // pred_check_branch
      %15 = sbr.rel (0) target = $region9
    $region8: #{tpu_custom_call.1} parent=1 // pred_region
      _
    $region9: #{tpu_custom_call.1} parent=1 // pred_fallthru
      _
    // Predicated region
    $region10: #{tpu_custom_call.1} parent=1 // pred_check
      _
    $region11: #{tpu_custom_call.1} parent=1 // pred_check_branch
      %17 = sbr.rel (0) target = $region13
    $region12: #{tpu_custom_call.1} parent=1 // pred_region
      _
    $region13: #{tpu_custom_call.1} parent=1 // pred_fallthru
      _
    %v18 = vld [vmem:[%s0] sm:$0xff]
    %v19 = vld [vmem:[%s0 + $0x8] sm:$0xff]
    %v22 = vcombine.high %v18, %v18
    %v23 = vcombine.high %v19, %v19
    %vm26 = vcmask 1043456
    %v27 = vsel %vm26, %v18, 0.0
    %v28 = vsel %vm26, %v22, 0.0
    %v29 = vadd.f32 %v27, %v28
    %30 = vadd.xlane.f32.xlu0 %v29
    %v31 = vpop.xlane.xlu0 %30
    %v32 = vsel %vm26, %v19, 0.0
    %v33 = vsel %vm26, %v23, 0.0
    %v34 = vadd.f32 %v32, %v33
    %35 = vadd.xlane.f32.xlu0 %v34
    %v36 = vpop.xlane.xlu0 %35
    %v37 = vrcp.pop 256.0
    %v38 = vmul.f32 %v31, %v37
    %v39 = vmul.f32 %v36, %v37
    %v40 = vld [vmem:[%s1] sm:$0xff]
    %v41 = vld [vmem:[%s1 + $0x8] sm:$0xff]
    %v42 = vld [vmem:[%s1 + $0x10] sm:$0xff]
    %v43 = vld [vmem:[%s1 + $0x18] sm:$0xff]
    %v46 = vlaneseq
    %v47 = vand.u32 %v46, 127
    %v48 = vlaneseq
    %v49 = vshrl.u32 %v48, 7
    %v50 = vsub.s32 %v47, %v49
    %v51 = vrot.slane %v38, %v50
    %v52 = vlaneseq
    %v53 = vshrl.u32 %v52, 7
    %v54 = vsub.s32 %v47, %v53
    %v55 = vrot.slane %v39, %v54
    %vm56 = vcmask 1041409
    %v57 = vsel %vm56, %v55, %v51
    %v62 = vcombine.high %v40, %v40
    %v63 = vcombine.high %v41, %v41
    %v64 = vcombine.high %v42, %v42
    %v65 = vcombine.high %v43, %v43
    %vm66 = vcmask 31744
    %v67 = vsel %vm66, %v57, 0
    %v69 = vsel %vm26, %v40, 0
    %v71 = vsel %vm26, %v62, 0
    %v73 = vsel %vm26, %v41, 0
    %v75 = vsel %vm26, %v63, 0
    %v77 = vsel %vm26, %v42, 0
    %v79 = vsel %vm26, %v64, 0
    %v81 = vsel %vm26, %v43, 0
    %v83 = vsel %vm26, %v65, 0
    %85 = vmatprep.subr.mxu0 0.0
    %86 = vmatpush1.msra.mxu0 0.0
    %87 = vmatprep.subr.mxu0 0.0
    %88 = vmatpush1.msra.mxu0 0.0
    %89 = vmatprep.subr.mxu0 0.0
    %90 = vmatpush1.msra.mxu0 0.0
    %91 = vmatprep.subr.mxu0 0.0
    %92 = vmatpush1.msra.mxu0 0.0
    %93 = vmatprep.subr.mxu0 0.0
    %94 = vmatpush1.msra.mxu0 0.0
    %95 = vmatprep.subr.mxu0 0.0
    %96 = vmatpush1.msra.mxu0 0.0
    %97 = vmatprep.subr.mxu0 0.0
    %98 = vmatpush1.msra.mxu0 0.0
    %99 = vmatprep.subr.mxu0 0.0
    %100 = vmatpush1.msra.mxu0 0.0
    %101 = vmatprep.subr.mxu0 0.0
    %102 = vmatpush1.msra.mxu0 0.0
    %103 = vmatprep.subr.mxu0 0.0
    %104 = vmatpush1.msra.mxu0 0.0
    %105 = vmatprep.subr.mxu0 0.0
    %106 = vmatpush1.msra.mxu0 0.0
    %107 = vmatprep.subr.mxu0 0.0
    %108 = vmatpush1.msra.mxu0 0.0
    %109 = vmatprep.subr.mxu0 0.0
    %110 = vmatpush1.msra.mxu0 0.0
    %111 = vmatprep.subr.mxu0 0.0
    %112 = vmatpush1.msra.mxu0 0.0
    %113 = vmatprep.subr.mxu0 0.0
    %114 = vmatpush1.msra.mxu0 0.0
    %115 = vmatprep.subr.mxu0 %v71
    %116 = vmatpush1.msra.mxu0 %v69
    %117 = vmatprep.subr.mxu0 0.0
    %118 = vmatpush2.msra.mxu0 0.0
    %119 = vmatprep.subr.mxu0 0.0
    %120 = vmatpush2.msra.mxu0 0.0
    %121 = vmatprep.subr.mxu0 0.0
    %122 = vmatpush2.msra.mxu0 0.0
    %123 = vmatprep.subr.mxu0 0.0
    %124 = vmatpush2.msra.mxu0 0.0
    %125 = vmatprep.subr.mxu0 0.0
    %126 = vmatpush2.msra.mxu0 0.0
    %127 = vmatprep.subr.mxu0 0.0
    %128 = vmatpush2.msra.mxu0 0.0
    %129 = vmatprep.subr.mxu0 0.0
    %130 = vmatpush2.msra.mxu0 0.0
    %131 = vmatprep.subr.mxu0 0.0
    %132 = vmatpush2.msra.mxu0 0.0
    %133 = vmatprep.subr.mxu0 0.0
    %134 = vmatpush2.msra.mxu0 0.0
    %135 = vmatprep.subr.mxu0 0.0
    %136 = vmatpush2.msra.mxu0 0.0
    %137 = vmatprep.subr.mxu0 0.0
    %138 = vmatpush2.msra.mxu0 0.0
    %139 = vmatprep.subr.mxu0 0.0
    %140 = vmatpush2.msra.mxu0 0.0
    %141 = vmatprep.subr.mxu0 0.0
    %142 = vmatpush2.msra.mxu0 0.0
    %143 = vmatprep.subr.mxu0 0.0
    %144 = vmatpush2.msra.mxu0 0.0
    %145 = vmatprep.subr.mxu0 0.0
    %146 = vmatpush2.msra.mxu0 0.0
    %147 = vmatprep.subr.mxu0 0.0
    %148 = vmatpush2.msra.mxu0 0.0
    %149 = vmatprep.mubr.f32.mxu0 0.0
    %150 = vmatmul.mubr.f32.gmra.mxu0 %v67
    %v151 = vpop.f32.mrf.mxu0
    %v152 = vadd.f32 0.0, %v151
    %v153 = vpop.f32.mrf.mxu0
    %v154 = vadd.f32 0.0, %v153
    %155 = vdwg.mxu0
    %156 = vmatprep.subr.mxu0 0.0
    %157 = vmatpush1.msra.mxu0 0.0
    %158 = vmatprep.subr.mxu0 0.0
    %159 = vmatpush1.msra.mxu0 0.0
    %160 = vmatprep.subr.mxu0 0.0
    %161 = vmatpush1.msra.mxu0 0.0
    %162 = vmatprep.subr.mxu0 0.0
    %163 = vmatpush1.msra.mxu0 0.0
    %164 = vmatprep.subr.mxu0 0.0
    %165 = vmatpush1.msra.mxu0 0.0
    %166 = vmatprep.subr.mxu0 0.0
    %167 = vmatpush1.msra.mxu0 0.0
    %168 = vmatprep.subr.mxu0 0.0
    %169 = vmatpush1.msra.mxu0 0.0
    %170 = vmatprep.subr.mxu0 0.0
    %171 = vmatpush1.msra.mxu0 0.0
    %172 = vmatprep.subr.mxu0 0.0
    %173 = vmatpush1.msra.mxu0 0.0
    %174 = vmatprep.subr.mxu0 0.0
    %175 = vmatpush1.msra.mxu0 0.0
    %176 = vmatprep.subr.mxu0 0.0
    %177 = vmatpush1.msra.mxu0 0.0
    %178 = vmatprep.subr.mxu0 0.0
    %179 = vmatpush1.msra.mxu0 0.0
    %180 = vmatprep.subr.mxu0 0.0
    %181 = vmatpush1.msra.mxu0 0.0
    %182 = vmatprep.subr.mxu0 0.0
    %183 = vmatpush1.msra.mxu0 0.0
    %184 = vmatprep.subr.mxu0 0.0
    %185 = vmatpush1.msra.mxu0 0.0
    %186 = vmatprep.subr.mxu0 %v75
    %187 = vmatpush1.msra.mxu0 %v73
    %188 = vmatprep.subr.mxu0 0.0
    %189 = vmatpush2.msra.mxu0 0.0
    %190 = vmatprep.subr.mxu0 0.0
    %191 = vmatpush2.msra.mxu0 0.0
    %192 = vmatprep.subr.mxu0 0.0
    %193 = vmatpush2.msra.mxu0 0.0
    %194 = vmatprep.subr.mxu0 0.0
    %195 = vmatpush2.msra.mxu0 0.0
    %196 = vmatprep.subr.mxu0 0.0
    %197 = vmatpush2.msra.mxu0 0.0
    %198 = vmatprep.subr.mxu0 0.0
    %199 = vmatpush2.msra.mxu0 0.0
    %200 = vmatprep.subr.mxu0 0.0
    %201 = vmatpush2.msra.mxu0 0.0
    %202 = vmatprep.subr.mxu0 0.0
    %203 = vmatpush2.msra.mxu0 0.0
    %204 = vmatprep.subr.mxu0 0.0
    %205 = vmatpush2.msra.mxu0 0.0
    %206 = vmatprep.subr.mxu0 0.0
    %207 = vmatpush2.msra.mxu0 0.0
    %208 = vmatprep.subr.mxu0 0.0
    %209 = vmatpush2.msra.mxu0 0.0
    %210 = vmatprep.subr.mxu0 0.0
    %211 = vmatpush2.msra.mxu0 0.0
    %212 = vmatprep.subr.mxu0 0.0
    %213 = vmatpush2.msra.mxu0 0.0
    %214 = vmatprep.subr.mxu0 0.0
    %215 = vmatpush2.msra.mxu0 0.0
    %216 = vmatprep.subr.mxu0 0.0
    %217 = vmatpush2.msra.mxu0 0.0
    %218 = vmatprep.subr.mxu0 0.0
    %219 = vmatpush2.msra.mxu0 0.0
    %220 = vmatprep.mubr.f32.mxu0 0.0
    %221 = vmatmul.mubr.f32.gmra.mxu0 %v67
    %v222 = vpop.f32.mrf.mxu0
    %v223 = vadd.f32 0.0, %v222
    %v224 = vpop.f32.mrf.mxu0
    %v225 = vadd.f32 0.0, %v224
    %226 = vdwg.mxu0
    %227 = vmatprep.subr.mxu0 0.0
    %228 = vmatpush1.msra.mxu0 0.0
    %229 = vmatprep.subr.mxu0 0.0
    %230 = vmatpush1.msra.mxu0 0.0
    %231 = vmatprep.subr.mxu0 0.0
    %232 = vmatpush1.msra.mxu0 0.0
    %233 = vmatprep.subr.mxu0 0.0
    %234 = vmatpush1.msra.mxu0 0.0
    %235 = vmatprep.subr.mxu0 0.0
    %236 = vmatpush1.msra.mxu0 0.0
    %237 = vmatprep.subr.mxu0 0.0
    %238 = vmatpush1.msra.mxu0 0.0
    %239 = vmatprep.subr.mxu0 0.0
    %240 = vmatpush1.msra.mxu0 0.0
    %241 = vmatprep.subr.mxu0 0.0
    %242 = vmatpush1.msra.mxu0 0.0
    %243 = vmatprep.subr.mxu0 0.0
    %244 = vmatpush1.msra.mxu0 0.0
    %245 = vmatprep.subr.mxu0 0.0
    %246 = vmatpush1.msra.mxu0 0.0
    %247 = vmatprep.subr.mxu0 0.0
    %248 = vmatpush1.msra.mxu0 0.0
    %249 = vmatprep.subr.mxu0 0.0
    %250 = vmatpush1.msra.mxu0 0.0
    %251 = vmatprep.subr.mxu0 0.0
    %252 = vmatpush1.msra.mxu0 0.0
    %253 = vmatprep.subr.mxu0 0.0
    %254 = vmatpush1.msra.mxu0 0.0
    %255 = vmatprep.subr.mxu0 0.0
    %256 = vmatpush1.msra.mxu0 0.0
    %257 = vmatprep.subr.mxu0 %v79
    %258 = vmatpush1.msra.mxu0 %v77
    %259 = vmatprep.subr.mxu0 0.0
    %260 = vmatpush2.msra.mxu0 0.0
    %261 = vmatprep.subr.mxu0 0.0
    %262 = vmatpush2.msra.mxu0 0.0
    %263 = vmatprep.subr.mxu0 0.0
    %264 = vmatpush2.msra.mxu0 0.0
    %265 = vmatprep.subr.mxu0 0.0
    %266 = vmatpush2.msra.mxu0 0.0
    %267 = vmatprep.subr.mxu0 0.0
    %268 = vmatpush2.msra.mxu0 0.0
    %269 = vmatprep.subr.mxu0 0.0
    %270 = vmatpush2.msra.mxu0 0.0
    %271 = vmatprep.subr.mxu0 0.0
    %272 = vmatpush2.msra.mxu0 0.0
    %273 = vmatprep.subr.mxu0 0.0
    %274 = vmatpush2.msra.mxu0 0.0
    %275 = vmatprep.subr.mxu0 0.0
    %276 = vmatpush2.msra.mxu0 0.0
    %277 = vmatprep.subr.mxu0 0.0
    %278 = vmatpush2.msra.mxu0 0.0
    %279 = vmatprep.subr.mxu0 0.0
    %280 = vmatpush2.msra.mxu0 0.0
    %281 = vmatprep.subr.mxu0 0.0
    %282 = vmatpush2.msra.mxu0 0.0
    %283 = vmatprep.subr.mxu0 0.0
    %284 = vmatpush2.msra.mxu0 0.0
    %285 = vmatprep.subr.mxu0 0.0
    %286 = vmatpush2.msra.mxu0 0.0
    %287 = vmatprep.subr.mxu0 0.0
    %288 = vmatpush2.msra.mxu0 0.0
    %289 = vmatprep.subr.mxu0 0.0
    %290 = vmatpush2.msra.mxu0 0.0
    %291 = vmatprep.mubr.f32.mxu0 0.0
    %292 = vmatmul.mubr.f32.gmra.mxu0 %v67
    %v293 = vpop.f32.mrf.mxu0
    %v294 = vadd.f32 0.0, %v293
    %v295 = vpop.f32.mrf.mxu0
    %v296 = vadd.f32 0.0, %v295
    %297 = vdwg.mxu0
    %298 = vmatprep.subr.mxu0 0.0
    %299 = vmatpush1.msra.mxu0 0.0
    %300 = vmatprep.subr.mxu0 0.0
    %301 = vmatpush1.msra.mxu0 0.0
    %302 = vmatprep.subr.mxu0 0.0
    %303 = vmatpush1.msra.mxu0 0.0
    %304 = vmatprep.subr.mxu0 0.0
    %305 = vmatpush1.msra.mxu0 0.0
    %306 = vmatprep.subr.mxu0 0.0
    %307 = vmatpush1.msra.mxu0 0.0
    %308 = vmatprep.subr.mxu0 0.0
    %309 = vmatpush1.msra.mxu0 0.0
    %310 = vmatprep.subr.mxu0 0.0
    %311 = vmatpush1.msra.mxu0 0.0
    %312 = vmatprep.subr.mxu0 0.0
    %313 = vmatpush1.msra.mxu0 0.0
    %314 = vmatprep.subr.mxu0 0.0
    %315 = vmatpush1.msra.mxu0 0.0
    %316 = vmatprep.subr.mxu0 0.0
    %317 = vmatpush1.msra.mxu0 0.0
    %318 = vmatprep.subr.mxu0 0.0
    %319 = vmatpush1.msra.mxu0 0.0
    %320 = vmatprep.subr.mxu0 0.0
    %321 = vmatpush1.msra.mxu0 0.0
    %322 = vmatprep.subr.mxu0 0.0
    %323 = vmatpush1.msra.mxu0 0.0
    %324 = vmatprep.subr.mxu0 0.0
    %325 = vmatpush1.msra.mxu0 0.0
    %326 = vmatprep.subr.mxu0 0.0
    %327 = vmatpush1.msra.mxu0 0.0
    %328 = vmatprep.subr.mxu0 %v83
    %329 = vmatpush1.msra.mxu0 %v81
    %330 = vmatprep.subr.mxu0 0.0
    %331 = vmatpush2.msra.mxu0 0.0
    %332 = vmatprep.subr.mxu0 0.0
    %333 = vmatpush2.msra.mxu0 0.0
    %334 = vmatprep.subr.mxu0 0.0
    %335 = vmatpush2.msra.mxu0 0.0
    %336 = vmatprep.subr.mxu0 0.0
    %337 = vmatpush2.msra.mxu0 0.0
    %338 = vmatprep.subr.mxu0 0.0
    %339 = vmatpush2.msra.mxu0 0.0
    %340 = vmatprep.subr.mxu0 0.0
    %341 = vmatpush2.msra.mxu0 0.0
    %342 = vmatprep.subr.mxu0 0.0
    %343 = vmatpush2.msra.mxu0 0.0
    %344 = vmatprep.subr.mxu0 0.0
    %345 = vmatpush2.msra.mxu0 0.0
    %346 = vmatprep.subr.mxu0 0.0
    %347 = vmatpush2.msra.mxu0 0.0
    %348 = vmatprep.subr.mxu0 0.0
    %349 = vmatpush2.msra.mxu0 0.0
    %350 = vmatprep.subr.mxu0 0.0
    %351 = vmatpush2.msra.mxu0 0.0
    %352 = vmatprep.subr.mxu0 0.0
    %353 = vmatpush2.msra.mxu0 0.0
    %354 = vmatprep.subr.mxu0 0.0
    %355 = vmatpush2.msra.mxu0 0.0
    %356 = vmatprep.subr.mxu0 0.0
    %357 = vmatpush2.msra.mxu0 0.0
    %358 = vmatprep.subr.mxu0 0.0
    %359 = vmatpush2.msra.mxu0 0.0
    %360 = vmatprep.subr.mxu0 0.0
    %361 = vmatpush2.msra.mxu0 0.0
    %362 = vmatprep.mubr.f32.mxu0 0.0
    %363 = vmatmul.mubr.f32.gmra.mxu0 %v67
    %v364 = vpop.f32.mrf.mxu0
    %v365 = vadd.f32 0.0, %v364
    %v366 = vpop.f32.mrf.mxu0
    %v367 = vadd.f32 0.0, %v366
    %368 = vdwg.mxu0
    %v369 = vld [vmem:[%s2] sm:$0xff]
    %v370 = vld [vmem:[%s2 + $0x8] sm:$0xff]
    %v371 = vld [vmem:[%s2 + $0x10] sm:$0xff]
    %v372 = vld [vmem:[%s2 + $0x18] sm:$0xff]
    %v373 = vld [vmem:[%s2 + $0x20] sm:$0xff]
    %v374 = vld [vmem:[%s2 + $0x28] sm:$0xff]
    %v375 = vld [vmem:[%s2 + $0x30] sm:$0xff]
    %v376 = vld [vmem:[%s2 + $0x38] sm:$0xff]
    %v377 = vld [vmem:[%s2 + $0x40] sm:$0xff]
    %v378 = vld [vmem:[%s2 + $0x48] sm:$0xff]
    %v379 = vld [vmem:[%s2 + $0x50] sm:$0xff]
    %v380 = vld [vmem:[%s2 + $0x58] sm:$0xff]
    %v381 = vld [vmem:[%s2 + $0x60] sm:$0xff]
    %v382 = vld [vmem:[%s2 + $0x68] sm:$0xff]
    %v383 = vld [vmem:[%s2 + $0x70] sm:$0xff]
    %v384 = vld [vmem:[%s2 + $0x78] sm:$0xff]
    %v385 = vld [vmem:[%s2 + $0x80] sm:$0xff]
    %v386 = vld [vmem:[%s2 + $0x88] sm:$0xff]
    %v387 = vld [vmem:[%s2 + $0x90] sm:$0xff]
    %v388 = vld [vmem:[%s2 + $0x98] sm:$0xff]
    %v389 = vld [vmem:[%s2 + $0xa0] sm:$0xff]
    %v390 = vld [vmem:[%s2 + $0xa8] sm:$0xff]
    %v391 = vld [vmem:[%s2 + $0xb0] sm:$0xff]
    %v392 = vld [vmem:[%s2 + $0xb8] sm:$0xff]
    %v393 = vld [vmem:[%s2 + $0xc0] sm:$0xff]
    %v394 = vld [vmem:[%s2 + $0xc8] sm:$0xff]
    %v395 = vld [vmem:[%s2 + $0xd0] sm:$0xff]
    %v396 = vld [vmem:[%s2 + $0xd8] sm:$0xff]
    %v397 = vld [vmem:[%s2 + $0xe0] sm:$0xff]
    %v398 = vld [vmem:[%s2 + $0xe8] sm:$0xff]
    %v399 = vld [vmem:[%s2 + $0xf0] sm:$0xff]
    %v400 = vld [vmem:[%s2 + $0xf8] sm:$0xff]
    %v401 = vld [vmem:[%s2 + $0x100] sm:$0xff]
    %v402 = vld [vmem:[%s2 + $0x108] sm:$0xff]
    %v403 = vld [vmem:[%s2 + $0x110] sm:$0xff]
    %v404 = vld [vmem:[%s2 + $0x118] sm:$0xff]
    %v405 = vld [vmem:[%s2 + $0x120] sm:$0xff]
    %v406 = vld [vmem:[%s2 + $0x128] sm:$0xff]
    %v407 = vld [vmem:[%s2 + $0x130] sm:$0xff]
    %v408 = vld [vmem:[%s2 + $0x138] sm:$0xff]
    %v409 = vld [vmem:[%s2 + $0x140] sm:$0xff]
    %v410 = vld [vmem:[%s2 + $0x148] sm:$0xff]
    %v411 = vld [vmem:[%s2 + $0x150] sm:$0xff]
    %v412 = vld [vmem:[%s2 + $0x158] sm:$0xff]
    %v413 = vld [vmem:[%s2 + $0x160] sm:$0xff]
    %v414 = vld [vmem:[%s2 + $0x168] sm:$0xff]
    %v415 = vld [vmem:[%s2 + $0x170] sm:$0xff]
    %v416 = vld [vmem:[%s2 + $0x178] sm:$0xff]
    %v417 = vld [vmem:[%s2 + $0x180] sm:$0xff]
    %v418 = vld [vmem:[%s2 + $0x188] sm:$0xff]
    %v419 = vld [vmem:[%s2 + $0x190] sm:$0xff]
    %v420 = vld [vmem:[%s2 + $0x198] sm:$0xff]
    %v421 = vld [vmem:[%s2 + $0x1a0] sm:$0xff]
    %v422 = vld [vmem:[%s2 + $0x1a8] sm:$0xff]
    %v423 = vld [vmem:[%s2 + $0x1b0] sm:$0xff]
    %v424 = vld [vmem:[%s2 + $0x1b8] sm:$0xff]
    %v425 = vld [vmem:[%s2 + $0x1c0] sm:$0xff]
    %v426 = vld [vmem:[%s2 + $0x1c8] sm:$0xff]
    %v427 = vld [vmem:[%s2 + $0x1d0] sm:$0xff]
    %v428 = vld [vmem:[%s2 + $0x1d8] sm:$0xff]
    %v429 = vld [vmem:[%s2 + $0x1e0] sm:$0xff]
    %v430 = vld [vmem:[%s2 + $0x1e8] sm:$0xff]
    %v431 = vld [vmem:[%s2 + $0x1f0] sm:$0xff]
    %v432 = vld [vmem:[%s2 + $0x1f8] sm:$0xff]
    %v433 = vld [vmem:[%s2 + $0x200] sm:$0xff]
    %v434 = vld [vmem:[%s2 + $0x208] sm:$0xff]
    %v435 = vld [vmem:[%s2 + $0x210] sm:$0xff]
    %v436 = vld [vmem:[%s2 + $0x218] sm:$0xff]
    %v437 = vld [vmem:[%s2 + $0x220] sm:$0xff]
    %v438 = vld [vmem:[%s2 + $0x228] sm:$0xff]
    %v439 = vld [vmem:[%s2 + $0x230] sm:$0xff]
    %v440 = vld [vmem:[%s2 + $0x238] sm:$0xff]
    %v441 = vld [vmem:[%s2 + $0x240] sm:$0xff]
    %v442 = vld [vmem:[%s2 + $0x248] sm:$0xff]
    %v443 = vld [vmem:[%s2 + $0x250] sm:$0xff]
    %v444 = vld [vmem:[%s2 + $0x258] sm:$0xff]
    %v445 = vld [vmem:[%s2 + $0x260] sm:$0xff]
    %v446 = vld [vmem:[%s2 + $0x268] sm:$0xff]
    %v447 = vld [vmem:[%s2 + $0x270] sm:$0xff]
    %v448 = vld [vmem:[%s2 + $0x278] sm:$0xff]
    %v449 = vld [vmem:[%s2 + $0x280] sm:$0xff]
    %v450 = vld [vmem:[%s2 + $0x288] sm:$0xff]
    %v451 = vld [vmem:[%s2 + $0x290] sm:$0xff]
    %v452 = vld [vmem:[%s2 + $0x298] sm:$0xff]
    %v453 = vld [vmem:[%s2 + $0x2a0] sm:$0xff]
    %v454 = vld [vmem:[%s2 + $0x2a8] sm:$0xff]
    %v455 = vld [vmem:[%s2 + $0x2b0] sm:$0xff]
    %v456 = vld [vmem:[%s2 + $0x2b8] sm:$0xff]
    %v457 = vld [vmem:[%s2 + $0x2c0] sm:$0xff]
    %v458 = vld [vmem:[%s2 + $0x2c8] sm:$0xff]
    %v459 = vld [vmem:[%s2 + $0x2d0] sm:$0xff]
    %v460 = vld [vmem:[%s2 + $0x2d8] sm:$0xff]
    %v461 = vld [vmem:[%s2 + $0x2e0] sm:$0xff]
    %v462 = vld [vmem:[%s2 + $0x2e8] sm:$0xff]
    %v463 = vld [vmem:[%s2 + $0x2f0] sm:$0xff]
    %v464 = vld [vmem:[%s2 + $0x2f8] sm:$0xff]
    %v465 = vld [vmem:[%s2 + $0x300] sm:$0xff]
    %v466 = vld [vmem:[%s2 + $0x308] sm:$0xff]
    %v467 = vld [vmem:[%s2 + $0x310] sm:$0xff]
    %v468 = vld [vmem:[%s2 + $0x318] sm:$0xff]
    %v469 = vld [vmem:[%s2 + $0x320] sm:$0xff]
    %v470 = vld [vmem:[%s2 + $0x328] sm:$0xff]
    %v471 = vld [vmem:[%s2 + $0x330] sm:$0xff]
    %v472 = vld [vmem:[%s2 + $0x338] sm:$0xff]
    %v473 = vld [vmem:[%s2 + $0x340] sm:$0xff]
    %v474 = vld [vmem:[%s2 + $0x348] sm:$0xff]
    %v475 = vld [vmem:[%s2 + $0x350] sm:$0xff]
    %v476 = vld [vmem:[%s2 + $0x358] sm:$0xff]
    %v477 = vld [vmem:[%s2 + $0x360] sm:$0xff]
    %v478 = vld [vmem:[%s2 + $0x368] sm:$0xff]
    %v479 = vld [vmem:[%s2 + $0x370] sm:$0xff]
    %v480 = vld [vmem:[%s2 + $0x378] sm:$0xff]
    %v481 = vld [vmem:[%s2 + $0x380] sm:$0xff]
    %v482 = vld [vmem:[%s2 + $0x388] sm:$0xff]
    %v483 = vld [vmem:[%s2 + $0x390] sm:$0xff]
    %v484 = vld [vmem:[%s2 + $0x398] sm:$0xff]
    %v485 = vld [vmem:[%s2 + $0x3a0] sm:$0xff]
    %v486 = vld [vmem:[%s2 + $0x3a8] sm:$0xff]
    %v487 = vld [vmem:[%s2 + $0x3b0] sm:$0xff]
    %v488 = vld [vmem:[%s2 + $0x3b8] sm:$0xff]
    %v489 = vld [vmem:[%s2 + $0x3c0] sm:$0xff]
    %v490 = vld [vmem:[%s2 + $0x3c8] sm:$0xff]
    %v491 = vld [vmem:[%s2 + $0x3d0] sm:$0xff]
    %v492 = vld [vmem:[%s2 + $0x3d8] sm:$0xff]
    %v493 = vld [vmem:[%s2 + $0x3e0] sm:$0xff]
    %v494 = vld [vmem:[%s2 + $0x3e8] sm:$0xff]
    %v495 = vld [vmem:[%s2 + $0x3f0] sm:$0xff]
    %v496 = vld [vmem:[%s2 + $0x3f8] sm:$0xff]
    %497 = vmatprep.subr.mxu0 0.0
    %498 = vmatpush1.msra.mxu0 %v384
    %499 = vmatprep.subr.mxu0 0.0
    %500 = vmatpush1.msra.mxu0 %v383
    %501 = vmatprep.subr.mxu0 0.0
    %502 = vmatpush1.msra.mxu0 %v382
    %503 = vmatprep.subr.mxu0 0.0
    %504 = vmatpush1.msra.mxu0 %v381
    %505 = vmatprep.subr.mxu0 0.0
    %506 = vmatpush1.msra.mxu0 %v380
    %507 = vmatprep.subr.mxu0 0.0
    %508 = vmatpush1.msra.mxu0 %v379
    %509 = vmatprep.subr.mxu0 0.0
    %510 = vmatpush1.msra.mxu0 %v378
    %511 = vmatprep.subr.mxu0 0.0
    %512 = vmatpush1.msra.mxu0 %v377
    %513 = vmatprep.subr.mxu0 0.0
    %514 = vmatpush1.msra.mxu0 %v376
    %515 = vmatprep.subr.mxu0 0.0
    %516 = vmatpush1.msra.mxu0 %v375
    %517 = vmatprep.subr.mxu0 0.0
    %518 = vmatpush1.msra.mxu0 %v374
    %519 = vmatprep.subr.mxu0 0.0
    %520 = vmatpush1.msra.mxu0 %v373
    %521 = vmatprep.subr.mxu0 0.0
    %522 = vmatpush1.msra.mxu0 %v372
    %523 = vmatprep.subr.mxu0 0.0
    %524 = vmatpush1.msra.mxu0 %v371
    %525 = vmatprep.subr.mxu0 0.0
    %526 = vmatpush1.msra.mxu0 %v370
    %527 = vmatprep.subr.mxu0 0.0
    %528 = vmatpush1.msra.mxu0 %v369
    %529 = vmatprep.subr.mxu0 0.0
    %530 = vmatpush2.msra.mxu0 %v400
    %531 = vmatprep.subr.mxu0 0.0
    %532 = vmatpush2.msra.mxu0 %v399
    %533 = vmatprep.subr.mxu0 0.0
    %534 = vmatpush2.msra.mxu0 %v398
    %535 = vmatprep.subr.mxu0 0.0
    %536 = vmatpush2.msra.mxu0 %v397
    %537 = vmatprep.subr.mxu0 0.0
    %538 = vmatpush2.msra.mxu0 %v396
    %539 = vmatprep.subr.mxu0 0.0
    %540 = vmatpush2.msra.mxu0 %v395
    %541 = vmatprep.subr.mxu0 0.0
    %542 = vmatpush2.msra.mxu0 %v394
    %543 = vmatprep.subr.mxu0 0.0
    %544 = vmatpush2.msra.mxu0 %v393
    %545 = vmatprep.subr.mxu0 0.0
    %546 = vmatpush2.msra.mxu0 %v392
    %547 = vmatprep.subr.mxu0 0.0
    %548 = vmatpush2.msra.mxu0 %v391
    %549 = vmatprep.subr.mxu0 0.0
    %550 = vmatpush2.msra.mxu0 %v390
    %551 = vmatprep.subr.mxu0 0.0
    %552 = vmatpush2.msra.mxu0 %v389
    %553 = vmatprep.subr.mxu0 0.0
    %554 = vmatpush2.msra.mxu0 %v388
    %555 = vmatprep.subr.mxu0 0.0
    %556 = vmatpush2.msra.mxu0 %v387
    %557 = vmatprep.subr.mxu0 0.0
    %558 = vmatpush2.msra.mxu0 %v386
    %559 = vmatprep.subr.mxu0 0.0
    %560 = vmatpush2.msra.mxu0 %v385
    %561 = vmatprep.mubr.f32.mxu0 %v154
    %562 = vmatmul.mubr.f32.gmra.mxu0 %v152
    %v563 = vpop.f32.mrf.mxu0
    %v564 = vadd.f32 0.0, %v563
    %v565 = vpop.f32.mrf.mxu0
    %566 = vdwg.mxu0
    %567 = vmatprep.subr.mxu0 0.0
    %568 = vmatpush1.msra.mxu0 %v416
    %569 = vmatprep.subr.mxu0 0.0
    %570 = vmatpush1.msra.mxu0 %v415
    %571 = vmatprep.subr.mxu0 0.0
    %572 = vmatpush1.msra.mxu0 %v414
    %573 = vmatprep.subr.mxu0 0.0
    %574 = vmatpush1.msra.mxu0 %v413
    %575 = vmatprep.subr.mxu0 0.0
    %576 = vmatpush1.msra.mxu0 %v412
    %577 = vmatprep.subr.mxu0 0.0
    %578 = vmatpush1.msra.mxu0 %v411
    %579 = vmatprep.subr.mxu0 0.0
    %580 = vmatpush1.msra.mxu0 %v410
    %581 = vmatprep.subr.mxu0 0.0
    %582 = vmatpush1.msra.mxu0 %v409
    %583 = vmatprep.subr.mxu0 0.0
    %584 = vmatpush1.msra.mxu0 %v408
    %585 = vmatprep.subr.mxu0 0.0
    %586 = vmatpush1.msra.mxu0 %v407
    %587 = vmatprep.subr.mxu0 0.0
    %588 = vmatpush1.msra.mxu0 %v406
    %589 = vmatprep.subr.mxu0 0.0
    %590 = vmatpush1.msra.mxu0 %v405
    %591 = vmatprep.subr.mxu0 0.0
    %592 = vmatpush1.msra.mxu0 %v404
    %593 = vmatprep.subr.mxu0 0.0
    %594 = vmatpush1.msra.mxu0 %v403
    %595 = vmatprep.subr.mxu0 0.0
    %596 = vmatpush1.msra.mxu0 %v402
    %597 = vmatprep.subr.mxu0 0.0
    %598 = vmatpush1.msra.mxu0 %v401
    %599 = vmatprep.subr.mxu0 0.0
    %600 = vmatpush2.msra.mxu0 %v432
    %601 = vmatprep.subr.mxu0 0.0
    %602 = vmatpush2.msra.mxu0 %v431
    %603 = vmatprep.subr.mxu0 0.0
    %604 = vmatpush2.msra.mxu0 %v430
    %605 = vmatprep.subr.mxu0 0.0
    %606 = vmatpush2.msra.mxu0 %v429
    %607 = vmatprep.subr.mxu0 0.0
    %608 = vmatpush2.msra.mxu0 %v428
    %609 = vmatprep.subr.mxu0 0.0
    %610 = vmatpush2.msra.mxu0 %v427
    %611 = vmatprep.subr.mxu0 0.0
    %612 = vmatpush2.msra.mxu0 %v426
    %613 = vmatprep.subr.mxu0 0.0
    %614 = vmatpush2.msra.mxu0 %v425
    %615 = vmatprep.subr.mxu0 0.0
    %616 = vmatpush2.msra.mxu0 %v424
    %617 = vmatprep.subr.mxu0 0.0
    %618 = vmatpush2.msra.mxu0 %v423
    %619 = vmatprep.subr.mxu0 0.0
    %620 = vmatpush2.msra.mxu0 %v422
    %621 = vmatprep.subr.mxu0 0.0
    %622 = vmatpush2.msra.mxu0 %v421
    %623 = vmatprep.subr.mxu0 0.0
    %624 = vmatpush2.msra.mxu0 %v420
    %625 = vmatprep.subr.mxu0 0.0
    %626 = vmatpush2.msra.mxu0 %v419
    %627 = vmatprep.subr.mxu0 0.0
    %628 = vmatpush2.msra.mxu0 %v418
    %629 = vmatprep.subr.mxu0 0.0
    %630 = vmatpush2.msra.mxu0 %v417
    %631 = vmatprep.mubr.f32.mxu0 %v225
    %632 = vmatmul.mubr.f32.gmra.mxu0 %v223
    %v633 = vpop.f32.mrf.mxu0
    %v634 = vadd.f32 %v564, %v633
    %v635 = vpop.f32.mrf.mxu0
    %636 = vdwg.mxu0
    %637 = vmatprep.subr.mxu0 0.0
    %638 = vmatpush1.msra.mxu0 %v448
    %639 = vmatprep.subr.mxu0 0.0
    %640 = vmatpush1.msra.mxu0 %v447
    %641 = vmatprep.subr.mxu0 0.0
    %642 = vmatpush1.msra.mxu0 %v446
    %643 = vmatprep.subr.mxu0 0.0
    %644 = vmatpush1.msra.mxu0 %v445
    %645 = vmatprep.subr.mxu0 0.0
    %646 = vmatpush1.msra.mxu0 %v444
    %647 = vmatprep.subr.mxu0 0.0
    %648 = vmatpush1.msra.mxu0 %v443
    %649 = vmatprep.subr.mxu0 0.0
    %650 = vmatpush1.msra.mxu0 %v442
    %651 = vmatprep.subr.mxu0 0.0
    %652 = vmatpush1.msra.mxu0 %v441
    %653 = vmatprep.subr.mxu0 0.0
    %654 = vmatpush1.msra.mxu0 %v440
    %655 = vmatprep.subr.mxu0 0.0
    %656 = vmatpush1.msra.mxu0 %v439
    %657 = vmatprep.subr.mxu0 0.0
    %658 = vmatpush1.msra.mxu0 %v438
    %659 = vmatprep.subr.mxu0 0.0
    %660 = vmatpush1.msra.mxu0 %v437
    %661 = vmatprep.subr.mxu0 0.0
    %662 = vmatpush1.msra.mxu0 %v436
    %663 = vmatprep.subr.mxu0 0.0
    %664 = vmatpush1.msra.mxu0 %v435
    %665 = vmatprep.subr.mxu0 0.0
    %666 = vmatpush1.msra.mxu0 %v434
    %667 = vmatprep.subr.mxu0 0.0
    %668 = vmatpush1.msra.mxu0 %v433
    %669 = vmatprep.subr.mxu0 0.0
    %670 = vmatpush2.msra.mxu0 %v464
    %671 = vmatprep.subr.mxu0 0.0
    %672 = vmatpush2.msra.mxu0 %v463
    %673 = vmatprep.subr.mxu0 0.0
    %674 = vmatpush2.msra.mxu0 %v462
    %675 = vmatprep.subr.mxu0 0.0
    %676 = vmatpush2.msra.mxu0 %v461
    %677 = vmatprep.subr.mxu0 0.0
    %678 = vmatpush2.msra.mxu0 %v460
    %679 = vmatprep.subr.mxu0 0.0
    %680 = vmatpush2.msra.mxu0 %v459
    %681 = vmatprep.subr.mxu0 0.0
    %682 = vmatpush2.msra.mxu0 %v458
    %683 = vmatprep.subr.mxu0 0.0
    %684 = vmatpush2.msra.mxu0 %v457
    %685 = vmatprep.subr.mxu0 0.0
    %686 = vmatpush2.msra.mxu0 %v456
    %687 = vmatprep.subr.mxu0 0.0
    %688 = vmatpush2.msra.mxu0 %v455
    %689 = vmatprep.subr.mxu0 0.0
    %690 = vmatpush2.msra.mxu0 %v454
    %691 = vmatprep.subr.mxu0 0.0
    %692 = vmatpush2.msra.mxu0 %v453
    %693 = vmatprep.subr.mxu0 0.0
    %694 = vmatpush2.msra.mxu0 %v452
    %695 = vmatprep.subr.mxu0 0.0
    %696 = vmatpush2.msra.mxu0 %v451
    %697 = vmatprep.subr.mxu0 0.0
    %698 = vmatpush2.msra.mxu0 %v450
    %699 = vmatprep.subr.mxu0 0.0
    %700 = vmatpush2.msra.mxu0 %v449
    %701 = vmatprep.mubr.f32.mxu0 %v296
    %702 = vmatmul.mubr.f32.gmra.mxu0 %v294
    %v703 = vpop.f32.mrf.mxu0
    %v704 = vadd.f32 %v634, %v703
    %v705 = vpop.f32.mrf.mxu0
    %706 = vdwg.mxu0
    %707 = vmatprep.subr.mxu0 0.0
    %708 = vmatpush1.msra.mxu0 %v480
    %709 = vmatprep.subr.mxu0 0.0
    %710 = vmatpush1.msra.mxu0 %v479
    %711 = vmatprep.subr.mxu0 0.0
    %712 = vmatpush1.msra.mxu0 %v478
    %713 = vmatprep.subr.mxu0 0.0
    %714 = vmatpush1.msra.mxu0 %v477
    %715 = vmatprep.subr.mxu0 0.0
    %716 = vmatpush1.msra.mxu0 %v476
    %717 = vmatprep.subr.mxu0 0.0
    %718 = vmatpush1.msra.mxu0 %v475
    %719 = vmatprep.subr.mxu0 0.0
    %720 = vmatpush1.msra.mxu0 %v474
    %721 = vmatprep.subr.mxu0 0.0
    %722 = vmatpush1.msra.mxu0 %v473
    %723 = vmatprep.subr.mxu0 0.0
    %724 = vmatpush1.msra.mxu0 %v472
    %725 = vmatprep.subr.mxu0 0.0
    %726 = vmatpush1.msra.mxu0 %v471
    %727 = vmatprep.subr.mxu0 0.0
    %728 = vmatpush1.msra.mxu0 %v470
    %729 = vmatprep.subr.mxu0 0.0
    %730 = vmatpush1.msra.mxu0 %v469
    %731 = vmatprep.subr.mxu0 0.0
    %732 = vmatpush1.msra.mxu0 %v468
    %733 = vmatprep.subr.mxu0 0.0
    %734 = vmatpush1.msra.mxu0 %v467
    %735 = vmatprep.subr.mxu0 0.0
    %736 = vmatpush1.msra.mxu0 %v466
    %737 = vmatprep.subr.mxu0 0.0
    %738 = vmatpush1.msra.mxu0 %v465
    %739 = vmatprep.subr.mxu0 0.0
    %740 = vmatpush2.msra.mxu0 %v496
    %741 = vmatprep.subr.mxu0 0.0
    %742 = vmatpush2.msra.mxu0 %v495
    %743 = vmatprep.subr.mxu0 0.0
    %744 = vmatpush2.msra.mxu0 %v494
    %745 = vmatprep.subr.mxu0 0.0
    %746 = vmatpush2.msra.mxu0 %v493
    %747 = vmatprep.subr.mxu0 0.0
    %748 = vmatpush2.msra.mxu0 %v492
    %749 = vmatprep.subr.mxu0 0.0
    %750 = vmatpush2.msra.mxu0 %v491
    %751 = vmatprep.subr.mxu0 0.0
    %752 = vmatpush2.msra.mxu0 %v490
    %753 = vmatprep.subr.mxu0 0.0
    %754 = vmatpush2.msra.mxu0 %v489
    %755 = vmatprep.subr.mxu0 0.0
    %756 = vmatpush2.msra.mxu0 %v488
    %757 = vmatprep.subr.mxu0 0.0
    %758 = vmatpush2.msra.mxu0 %v487
    %759 = vmatprep.subr.mxu0 0.0
    %760 = vmatpush2.msra.mxu0 %v486
    %761 = vmatprep.subr.mxu0 0.0
    %762 = vmatpush2.msra.mxu0 %v485
    %763 = vmatprep.subr.mxu0 0.0
    %764 = vmatpush2.msra.mxu0 %v484
    %765 = vmatprep.subr.mxu0 0.0
    %766 = vmatpush2.msra.mxu0 %v483
    %767 = vmatprep.subr.mxu0 0.0
    %768 = vmatpush2.msra.mxu0 %v482
    %769 = vmatprep.subr.mxu0 0.0
    %770 = vmatpush2.msra.mxu0 %v481
    %771 = vmatprep.mubr.f32.mxu0 %v367
    %772 = vmatmul.mubr.f32.gmra.mxu0 %v365
    %v773 = vpop.f32.mrf.mxu0
    %v774 = vadd.f32 %v704, %v773
    %v775 = vpop.f32.mrf.mxu0
    %776 = vdwg.mxu0
    %v777 = vmax.f32 %v774, 0.0
    %v780 = vunpack.c.l.s4 1966171168
    %v781 = vunpack.c.0.s8 %v780
    %v782 = vlaneseq
    %v783 = vshrl.u32 %v782, 7
    %v784 = vsub.s32 %v781, %v783
    %v785 = vrot.slane %v777, %v784
    %v786 = vcombine.high %v785, %v785
    %v788 = vunpack.c.l.s4 1966171168
    %v789 = vunpack.c.0.s8 %v788
    %v790 = vlaneseq
    %v791 = vshrl.u32 %v790, 7
    %v792 = vsub.s32 %v789, %v791
    %v793 = vrot.slane %v785, %v792
    %v795 = vunpack.c.l.s4 1966171168
    %v796 = vunpack.c.0.s8 %v795
    %v797 = vlaneseq
    %v798 = vshrl.u32 %v797, 7
    %v799 = vsub.s32 %v796, %v798
    %v800 = vrot.slane %v786, %v799
    %vm803 = vcmask 24576
    %804 = vst.msk [vmem:[#allocation2] sm:$0x1] %vm803, %v793
    %805 = vst.msk [vmem:[#allocation2 + $0x1] sm:$0x1] %vm803, %v800
    %v806 = vlaneseq
    %v807 = vshrl.u32 %v806, 7
    %v808 = vsub.s32 0, %v807
    %v809 = vrot.slane %v777, %v808
    %811 = vbcast.lane.b32.xlu0 %v809, 256
    %v812 = vpop.permute.xlu0 %811
    %v813 = vlaneseq
    %v814 = vshrl.u32 %v813, 7
    %v815 = vsub.s32 1, %v814
    %v816 = vrot.slane %v777, %v815
    %818 = vbcast.lane.b32.xlu0 %v816, 256
    %v819 = vpop.permute.xlu0 %818
    %v823 = vunpack.c.l.s4 839922192
    %v824 = vunpack.c.0.s8 %v823
    %v825 = vlaneseq
    %v826 = vshrl.u32 %v825, 7
    %v827 = vsub.s32 %v824, %v826
    %v828 = vrot.slane %v812, %v827
    %v830 = vunpack.c.l.s4 839922192
    %v831 = vunpack.c.0.s8 %v830
    %v832 = vlaneseq
    %v833 = vshrl.u32 %v832, 7
    %v834 = vsub.s32 %v831, %v833
    %v835 = vrot.slane %v819, %v834
    %v838 = vmul.f32 %v18, %v828
    %v839 = vmul.f32 %v19, %v835
    %840 = vst [vmem:[#allocation4] sm:$0xff] %v838
    %841 = vst [vmem:[#allocation4 + $0x8] sm:$0xff] %v839
    // Predicated region
    $region14: #{tpu_custom_call.1} parent=1 // pred_check
      _
    $region15: #{tpu_custom_call.1} parent=1 // pred_check_branch
      %843 = sbr.rel (0) target = $region17
    $region16: #{tpu_custom_call.1} parent=1 // pred_region
      %s845 = ssub.s32 32, 32
      %846 = vsyncadd [#allocation3], %s845
      %s847 = sshll.u32 [#allocation2], 4
      %s848 = int_to_ptr.vmem [resolvable:$true] %s847
      %853 = dma.vmem_to_hbm [thread:$0]  %s848, 32, %s3, [#allocation3], 16, 16, 1
    $region17: #{tpu_custom_call.1} parent=1 // pred_fallthru
      _
    // Predicated region
    $region18: #{tpu_custom_call.1} parent=1 // pred_check
      _
    $region19: #{tpu_custom_call.1} parent=1 // pred_check_branch
      %855 = sbr.rel (0) target = $region21
    $region20: #{tpu_custom_call.1} parent=1 // pred_region
      %s857 = ssub.s32 256, 256
      %858 = vsyncadd [#allocation5], %s857
      %s859 = sshll.u32 [#allocation4], 4
      %s860 = int_to_ptr.vmem [resolvable:$true] %s859
      %865 = dma.vmem_to_hbm [thread:$0]  %s860, 256, %s4, [#allocation5], 128, 128, 8
    $region21: #{tpu_custom_call.1} parent=1 // pred_fallthru
      _
    // Predicated region
    $region22: #{tpu_custom_call.1} parent=1 // pred_check
      _
    $region23: #{tpu_custom_call.1} parent=1 // pred_check_branch
      %867 = sbr.rel (0) target = $region25
    $region24: #{tpu_custom_call.1} parent=1 // pred_region
      %868 = dma.done [#allocation3], 32
    $region25: #{tpu_custom_call.1} parent=1 // pred_fallthru
      _
    // Predicated region
    $region26: #{tpu_custom_call.1} parent=1 // pred_check
      _
    $region27: #{tpu_custom_call.1} parent=1 // pred_check_branch
      %870 = sbr.rel (0) target = $region29
    $region28: #{tpu_custom_call.1} parent=1 // pred_region
      %871 = dma.done [#allocation5], 256
    $region29: #{tpu_custom_call.1} parent=1 // pred_fallthru
      _
    %872 = vsyncpa [#allocation3], 1
    %873 = vsyncpa [#allocation5], 1

// kernel: tpu_custom_call.1
$region0: #{tpu_custom_call.1}
  #allocation0 [shape = 'u32[]', space=smem, size = 0x4, offset = 0x4, fixed_abs, tag = 'smem constant byte address 0x4 - core index']
  #allocation1 [shape = 'u32[144,128]{1,0:T(1,128)}', space=vmem, size = 0x12000, scoped, tag = 'internal scratch']
  %s0 = inlined_call_operand.vmem [shape: f32[2,4,256], index: 0, kind: input, shape index: {}]
  %s1 = inlined_call_operand.vmem [shape: f32[4,1024], index: 1, kind: input, shape index: {}]
  %s2 = inlined_call_operand.vmem [shape: f32[1024,4], index: 2, kind: input, shape index: {}]
  %s3 = inlined_call_operand.hbm [shape: f32[2,1,4], index: 3, kind: output, shape index: {0}]
  %s4 = inlined_call_operand.hbm [shape: f32[2,4,256], index: 4, kind: output, shape index: {1}]
  %5 = xla_tuple %s3, %s4
  %s6 = sld [smem:[#allocation0]]
  $region30: #{tpu_custom_call.1} parent=0
    _
  %s8 = ssub.s32 1, %s6
  %s9 = scalar_select 0, %s8, %s6
  $region1: #{tpu_custom_call.1} parent=0
    #allocation2 [shape = 'u8[1024]{0}', space=vmem, size = 0x400, scoped, tag = 'output window, operand 0, single buffered']
    #allocation3 [shape = 's32[1]{0}', space=sflag, size = 0x4, scoped, tag = 'scoped memory for tpu_custom_call.1']
    #allocation4 [shape = 'u8[8192]{0}', space=vmem, size = 0x2000, scoped, tag = 'output window, operand 1, single buffered']
    #allocation5 [shape = 's32[1]{0}', space=sflag, size = 0x4, scoped, tag = 'scoped memory for tpu_custom_call.1']
    %10 = vsyncpa [#allocation3], 0
    %11 = vsyncpa [#allocation5], 0
    // Predicated region
    $region2: #{tpu_custom_call.1} parent=1 // pred_check
      _
    $region3: #{tpu_custom_call.1} parent=1 // pred_check_branch
      %13 = sbr.rel (0) target = $region5
    $region4: #{tpu_custom_call.1} parent=1 // pred_region
      _
    $region5: #{tpu_custom_call.1} parent=1 // pred_fallthru
      _
    // Predicated region
    $region6: #{tpu_custom_call.1} parent=1 // pred_check
      _
    $region7: #{tpu_custom_call.1} parent=1 // pred_check_branch
      %15 = sbr.rel (0) target = $region9
    $region8: #{tpu_custom_call.1} parent=1 // pred_region
      _
    $region9: #{tpu_custom_call.1} parent=1 // pred_fallthru
      _
    // Predicated region
    $region10: #{tpu_custom_call.1} parent=1 // pred_check
      _
    $region11: #{tpu_custom_call.1} parent=1 // pred_check_branch
      %17 = sbr.rel (0) target = $region13
    $region12: #{tpu_custom_call.1} parent=1 // pred_region
      _
    $region13: #{tpu_custom_call.1} parent=1 // pred_fallthru
      _
    %v18 = vld [vmem:[%s0] sm:$0xff]
    %v19 = vld [vmem:[%s0 + $0x8] sm:$0xff]
    %v22 = vcombine.high %v18, %v18
    %v23 = vcombine.high %v19, %v19
    %vm26 = vcmask 1043456
    %v27 = vsel %vm26, %v18, 0.0
    %v28 = vsel %vm26, %v22, 0.0
    %v29 = vadd.f32 %v27, %v28
    %30 = vadd.xlane.f32.xlu0 %v29
    %v31 = vpop.xlane.xlu0 %30
    %v32 = vsel %vm26, %v19, 0.0
    %v33 = vsel %vm26, %v23, 0.0
    %v34 = vadd.f32 %v32, %v33
    %35 = vadd.xlane.f32.xlu0 %v34
    %v36 = vpop.xlane.xlu0 %35
    %v37 = vrcp.pop 256.0
    %v38 = vmul.f32 %v31, %v37
    %v39 = vmul.f32 %v36, %v37
    %v40 = vld [vmem:[%s1] sm:$0xff]
    %v41 = vld [vmem:[%s1 + $0x8] sm:$0xff]
    %v42 = vld [vmem:[%s1 + $0x10] sm:$0xff]
    %v43 = vld [vmem:[%s1 + $0x18] sm:$0xff]
    %v46 = vlaneseq
    %v47 = vand.u32 %v46, 127
    %v48 = vlaneseq
    %v49 = vshrl.u32 %v48, 7
    %v50 = vsub.s32 %v47, %v49
    %v51 = vrot.slane %v38, %v50
    %v52 = vlaneseq
    %v53 = vshrl.u32 %v52, 7
    %v54 = vsub.s32 %v47, %v53
    %v55 = vrot.slane %v39, %v54
    %vm56 = vcmask 1041409
    %v57 = vsel %vm56, %v55, %v51
    %v62 = vcombine.high %v40, %v40
    %v63 = vcombine.high %v41, %v41
    %v64 = vcombine.high %v42, %v42
    %v65 = vcombine.high %v43, %v43
    %vm66 = vcmask 31744
    %v67 = vsel %vm66, %v57, 0
    %v69 = vsel %vm26, %v40, 0
    %v71 = vsel %vm26, %v62, 0
    %v73 = vsel %vm26, %v41, 0
    %v75 = vsel %vm26, %v63, 0
    %v77 = vsel %vm26, %v42, 0
    %v79 = vsel %vm26, %v64, 0
    %v81 = vsel %vm26, %v43, 0
    %v83 = vsel %vm26, %v65, 0
    %85 = vmatprep.subr.mxu0 0.0
    %86 = vmatpush1.msra.mxu0 0.0
    %87 = vmatprep.subr.mxu0 0.0
    %88 = vmatpush1.msra.mxu0 0.0
    %89 = vmatprep.subr.mxu0 0.0
    %90 = vmatpush1.msra.mxu0 0.0
    %91 = vmatprep.subr.mxu0 0.0
    %92 = vmatpush1.msra.mxu0 0.0
    %93 = vmatprep.subr.mxu0 0.0
    %94 = vmatpush1.msra.mxu0 0.0
    %95 = vmatprep.subr.mxu0 0.0
    %96 = vmatpush1.msra.mxu0 0.0
    %97 = vmatprep.subr.mxu0 0.0
    %98 = vmatpush1.msra.mxu0 0.0
    %99 = vmatprep.subr.mxu0 0.0
    %100 = vmatpush1.msra.mxu0 0.0
    %101 = vmatprep.subr.mxu0 0.0
    %102 = vmatpush1.msra.mxu0 0.0
    %103 = vmatprep.subr.mxu0 0.0
    %104 = vmatpush1.msra.mxu0 0.0
    %105 = vmatprep.subr.mxu0 0.0
    %106 = vmatpush1.msra.mxu0 0.0
    %107 = vmatprep.subr.mxu0 0.0
    %108 = vmatpush1.msra.mxu0 0.0
    %109 = vmatprep.subr.mxu0 0.0
    %110 = vmatpush1.msra.mxu0 0.0
    %111 = vmatprep.subr.mxu0 0.0
    %112 = vmatpush1.msra.mxu0 0.0
    %113 = vmatprep.subr.mxu0 0.0
    %114 = vmatpush1.msra.mxu0 0.0
    %115 = vmatprep.subr.mxu0 %v71
    %116 = vmatpush1.msra.mxu0 %v69
    %117 = vmatprep.subr.mxu0 0.0
    %118 = vmatpush2.msra.mxu0 0.0
    %119 = vmatprep.subr.mxu0 0.0
    %120 = vmatpush2.msra.mxu0 0.0
    %121 = vmatprep.subr.mxu0 0.0
    %122 = vmatpush2.msra.mxu0 0.0
    %123 = vmatprep.subr.mxu0 0.0
    %124 = vmatpush2.msra.mxu0 0.0
    %125 = vmatprep.subr.mxu0 0.0
    %126 = vmatpush2.msra.mxu0 0.0
    %127 = vmatprep.subr.mxu0 0.0
    %128 = vmatpush2.msra.mxu0 0.0
    %129 = vmatprep.subr.mxu0 0.0
    %130 = vmatpush2.msra.mxu0 0.0
    %131 = vmatprep.subr.mxu0 0.0
    %132 = vmatpush2.msra.mxu0 0.0
    %133 = vmatprep.subr.mxu0 0.0
    %134 = vmatpush2.msra.mxu0 0.0
    %135 = vmatprep.subr.mxu0 0.0
    %136 = vmatpush2.msra.mxu0 0.0
    %137 = vmatprep.subr.mxu0 0.0
    %138 = vmatpush2.msra.mxu0 0.0
    %139 = vmatprep.subr.mxu0 0.0
    %140 = vmatpush2.msra.mxu0 0.0
    %141 = vmatprep.subr.mxu0 0.0
    %142 = vmatpush2.msra.mxu0 0.0
    %143 = vmatprep.subr.mxu0 0.0
    %144 = vmatpush2.msra.mxu0 0.0
    %145 = vmatprep.subr.mxu0 0.0
    %146 = vmatpush2.msra.mxu0 0.0
    %147 = vmatprep.subr.mxu0 0.0
    %148 = vmatpush2.msra.mxu0 0.0
    %149 = vmatprep.mubr.f32.mxu0 0.0
    %150 = vmatmul.mubr.f32.gmra.mxu0 %v67
    %v151 = vpop.f32.mrf.mxu0
    %v152 = vadd.f32 0.0, %v151
    %v153 = vpop.f32.mrf.mxu0
    %v154 = vadd.f32 0.0, %v153
    %155 = vdwg.mxu0
    %156 = vmatprep.subr.mxu0 0.0
    %157 = vmatpush1.msra.mxu0 0.0
    %158 = vmatprep.subr.mxu0 0.0
    %159 = vmatpush1.msra.mxu0 0.0
    %160 = vmatprep.subr.mxu0 0.0
    %161 = vmatpush1.msra.mxu0 0.0
    %162 = vmatprep.subr.mxu0 0.0
    %163 = vmatpush1.msra.mxu0 0.0
    %164 = vmatprep.subr.mxu0 0.0
    %165 = vmatpush1.msra.mxu0 0.0
    %166 = vmatprep.subr.mxu0 0.0
    %167 = vmatpush1.msra.mxu0 0.0
    %168 = vmatprep.subr.mxu0 0.0
    %169 = vmatpush1.msra.mxu0 0.0
    %170 = vmatprep.subr.mxu0 0.0
    %171 = vmatpush1.msra.mxu0 0.0
    %172 = vmatprep.subr.mxu0 0.0
    %173 = vmatpush1.msra.mxu0 0.0
    %174 = vmatprep.subr.mxu0 0.0
    %175 = vmatpush1.msra.mxu0 0.0
    %176 = vmatprep.subr.mxu0 0.0
    %177 = vmatpush1.msra.mxu0 0.0
    %178 = vmatprep.subr.mxu0 0.0
    %179 = vmatpush1.msra.mxu0 0.0
    %180 = vmatprep.subr.mxu0 0.0
    %181 = vmatpush1.msra.mxu0 0.0
    %182 = vmatprep.subr.mxu0 0.0
    %183 = vmatpush1.msra.mxu0 0.0
    %184 = vmatprep.subr.mxu0 0.0
    %185 = vmatpush1.msra.mxu0 0.0
    %186 = vmatprep.subr.mxu0 %v75
    %187 = vmatpush1.msra.mxu0 %v73
    %188 = vmatprep.subr.mxu0 0.0
    %189 = vmatpush2.msra.mxu0 0.0
    %190 = vmatprep.subr.mxu0 0.0
    %191 = vmatpush2.msra.mxu0 0.0
    %192 = vmatprep.subr.mxu0 0.0
    %193 = vmatpush2.msra.mxu0 0.0
    %194 = vmatprep.subr.mxu0 0.0
    %195 = vmatpush2.msra.mxu0 0.0
    %196 = vmatprep.subr.mxu0 0.0
    %197 = vmatpush2.msra.mxu0 0.0
    %198 = vmatprep.subr.mxu0 0.0
    %199 = vmatpush2.msra.mxu0 0.0
    %200 = vmatprep.subr.mxu0 0.0
    %201 = vmatpush2.msra.mxu0 0.0
    %202 = vmatprep.subr.mxu0 0.0
    %203 = vmatpush2.msra.mxu0 0.0
    %204 = vmatprep.subr.mxu0 0.0
    %205 = vmatpush2.msra.mxu0 0.0
    %206 = vmatprep.subr.mxu0 0.0
    %207 = vmatpush2.msra.mxu0 0.0
    %208 = vmatprep.subr.mxu0 0.0
    %209 = vmatpush2.msra.mxu0 0.0
    %210 = vmatprep.subr.mxu0 0.0
    %211 = vmatpush2.msra.mxu0 0.0
    %212 = vmatprep.subr.mxu0 0.0
    %213 = vmatpush2.msra.mxu0 0.0
    %214 = vmatprep.subr.mxu0 0.0
    %215 = vmatpush2.msra.mxu0 0.0
    %216 = vmatprep.subr.mxu0 0.0
    %217 = vmatpush2.msra.mxu0 0.0
    %218 = vmatprep.subr.mxu0 0.0
    %219 = vmatpush2.msra.mxu0 0.0
    %220 = vmatprep.mubr.f32.mxu0 0.0
    %221 = vmatmul.mubr.f32.gmra.mxu0 %v67
    %v222 = vpop.f32.mrf.mxu0
    %v223 = vadd.f32 0.0, %v222
    %v224 = vpop.f32.mrf.mxu0
    %v225 = vadd.f32 0.0, %v224
    %226 = vdwg.mxu0
    %227 = vmatprep.subr.mxu0 0.0
    %228 = vmatpush1.msra.mxu0 0.0
    %229 = vmatprep.subr.mxu0 0.0
    %230 = vmatpush1.msra.mxu0 0.0
    %231 = vmatprep.subr.mxu0 0.0
    %232 = vmatpush1.msra.mxu0 0.0
    %233 = vmatprep.subr.mxu0 0.0
    %234 = vmatpush1.msra.mxu0 0.0
    %235 = vmatprep.subr.mxu0 0.0
    %236 = vmatpush1.msra.mxu0 0.0
    %237 = vmatprep.subr.mxu0 0.0
    %238 = vmatpush1.msra.mxu0 0.0
    %239 = vmatprep.subr.mxu0 0.0
    %240 = vmatpush1.msra.mxu0 0.0
    %241 = vmatprep.subr.mxu0 0.0
    %242 = vmatpush1.msra.mxu0 0.0
    %243 = vmatprep.subr.mxu0 0.0
    %244 = vmatpush1.msra.mxu0 0.0
    %245 = vmatprep.subr.mxu0 0.0
    %246 = vmatpush1.msra.mxu0 0.0
    %247 = vmatprep.subr.mxu0 0.0
    %248 = vmatpush1.msra.mxu0 0.0
    %249 = vmatprep.subr.mxu0 0.0
    %250 = vmatpush1.msra.mxu0 0.0
    %251 = vmatprep.subr.mxu0 0.0
    %252 = vmatpush1.msra.mxu0 0.0
    %253 = vmatprep.subr.mxu0 0.0
    %254 = vmatpush1.msra.mxu0 0.0
    %255 = vmatprep.subr.mxu0 0.0
    %256 = vmatpush1.msra.mxu0 0.0
    %257 = vmatprep.subr.mxu0 %v79
    %258 = vmatpush1.msra.mxu0 %v77
    %259 = vmatprep.subr.mxu0 0.0
    %260 = vmatpush2.msra.mxu0 0.0
    %261 = vmatprep.subr.mxu0 0.0
    %262 = vmatpush2.msra.mxu0 0.0
    %263 = vmatprep.subr.mxu0 0.0
    %264 = vmatpush2.msra.mxu0 0.0
    %265 = vmatprep.subr.mxu0 0.0
    %266 = vmatpush2.msra.mxu0 0.0
    %267 = vmatprep.subr.mxu0 0.0
    %268 = vmatpush2.msra.mxu0 0.0
    %269 = vmatprep.subr.mxu0 0.0
    %270 = vmatpush2.msra.mxu0 0.0
    %271 = vmatprep.subr.mxu0 0.0
    %272 = vmatpush2.msra.mxu0 0.0
    %273 = vmatprep.subr.mxu0 0.0
    %274 = vmatpush2.msra.mxu0 0.0
    %275 = vmatprep.subr.mxu0 0.0
    %276 = vmatpush2.msra.mxu0 0.0
    %277 = vmatprep.subr.mxu0 0.0
    %278 = vmatpush2.msra.mxu0 0.0
    %279 = vmatprep.subr.mxu0 0.0
    %280 = vmatpush2.msra.mxu0 0.0
    %281 = vmatprep.subr.mxu0 0.0
    %282 = vmatpush2.msra.mxu0 0.0
    %283 = vmatprep.subr.mxu0 0.0
    %284 = vmatpush2.msra.mxu0 0.0
    %285 = vmatprep.subr.mxu0 0.0
    %286 = vmatpush2.msra.mxu0 0.0
    %287 = vmatprep.subr.mxu0 0.0
    %288 = vmatpush2.msra.mxu0 0.0
    %289 = vmatprep.subr.mxu0 0.0
    %290 = vmatpush2.msra.mxu0 0.0
    %291 = vmatprep.mubr.f32.mxu0 0.0
    %292 = vmatmul.mubr.f32.gmra.mxu0 %v67
    %v293 = vpop.f32.mrf.mxu0
    %v294 = vadd.f32 0.0, %v293
    %v295 = vpop.f32.mrf.mxu0
    %v296 = vadd.f32 0.0, %v295
    %297 = vdwg.mxu0
    %298 = vmatprep.subr.mxu0 0.0
    %299 = vmatpush1.msra.mxu0 0.0
    %300 = vmatprep.subr.mxu0 0.0
    %301 = vmatpush1.msra.mxu0 0.0
    %302 = vmatprep.subr.mxu0 0.0
    %303 = vmatpush1.msra.mxu0 0.0
    %304 = vmatprep.subr.mxu0 0.0
    %305 = vmatpush1.msra.mxu0 0.0
    %306 = vmatprep.subr.mxu0 0.0
    %307 = vmatpush1.msra.mxu0 0.0
    %308 = vmatprep.subr.mxu0 0.0
    %309 = vmatpush1.msra.mxu0 0.0
    %310 = vmatprep.subr.mxu0 0.0
    %311 = vmatpush1.msra.mxu0 0.0
    %312 = vmatprep.subr.mxu0 0.0
    %313 = vmatpush1.msra.mxu0 0.0
    %314 = vmatprep.subr.mxu0 0.0
    %315 = vmatpush1.msra.mxu0 0.0
    %316 = vmatprep.subr.mxu0 0.0
    %317 = vmatpush1.msra.mxu0 0.0
    %318 = vmatprep.subr.mxu0 0.0
    %319 = vmatpush1.msra.mxu0 0.0
    %320 = vmatprep.subr.mxu0 0.0
    %321 = vmatpush1.msra.mxu0 0.0
    %322 = vmatprep.subr.mxu0 0.0
    %323 = vmatpush1.msra.mxu0 0.0
    %324 = vmatprep.subr.mxu0 0.0
    %325 = vmatpush1.msra.mxu0 0.0
    %326 = vmatprep.subr.mxu0 0.0
    %327 = vmatpush1.msra.mxu0 0.0
    %328 = vmatprep.subr.mxu0 %v83
    %329 = vmatpush1.msra.mxu0 %v81
    %330 = vmatprep.subr.mxu0 0.0
    %331 = vmatpush2.msra.mxu0 0.0
    %332 = vmatprep.subr.mxu0 0.0
    %333 = vmatpush2.msra.mxu0 0.0
    %334 = vmatprep.subr.mxu0 0.0
    %335 = vmatpush2.msra.mxu0 0.0
    %336 = vmatprep.subr.mxu0 0.0
    %337 = vmatpush2.msra.mxu0 0.0
    %338 = vmatprep.subr.mxu0 0.0
    %339 = vmatpush2.msra.mxu0 0.0
    %340 = vmatprep.subr.mxu0 0.0
    %341 = vmatpush2.msra.mxu0 0.0
    %342 = vmatprep.subr.mxu0 0.0
    %343 = vmatpush2.msra.mxu0 0.0
    %344 = vmatprep.subr.mxu0 0.0
    %345 = vmatpush2.msra.mxu0 0.0
    %346 = vmatprep.subr.mxu0 0.0
    %347 = vmatpush2.msra.mxu0 0.0
    %348 = vmatprep.subr.mxu0 0.0
    %349 = vmatpush2.msra.mxu0 0.0
    %350 = vmatprep.subr.mxu0 0.0
    %351 = vmatpush2.msra.mxu0 0.0
    %352 = vmatprep.subr.mxu0 0.0
    %353 = vmatpush2.msra.mxu0 0.0
    %354 = vmatprep.subr.mxu0 0.0
    %355 = vmatpush2.msra.mxu0 0.0
    %356 = vmatprep.subr.mxu0 0.0
    %357 = vmatpush2.msra.mxu0 0.0
    %358 = vmatprep.subr.mxu0 0.0
    %359 = vmatpush2.msra.mxu0 0.0
    %360 = vmatprep.subr.mxu0 0.0
    %361 = vmatpush2.msra.mxu0 0.0
    %362 = vmatprep.mubr.f32.mxu0 0.0
    %363 = vmatmul.mubr.f32.gmra.mxu0 %v67
    %v364 = vpop.f32.mrf.mxu0
    %v365 = vadd.f32 0.0, %v364
    %v366 = vpop.f32.mrf.mxu0
    %v367 = vadd.f32 0.0, %v366
    %368 = vdwg.mxu0
    %v369 = vld [vmem:[%s2] sm:$0xff]
    %v370 = vld [vmem:[%s2 + $0x8] sm:$0xff]
    %v371 = vld [vmem:[%s2 + $0x10] sm:$0xff]
    %v372 = vld [vmem:[%s2 + $0x18] sm:$0xff]
    %v373 = vld [vmem:[%s2 + $0x20] sm:$0xff]
    %v374 = vld [vmem:[%s2 + $0x28] sm:$0xff]
    %v375 = vld [vmem:[%s2 + $0x30] sm:$0xff]
    %v376 = vld [vmem:[%s2 + $0x38] sm:$0xff]
    %v377 = vld [vmem:[%s2 + $0x40] sm:$0xff]
    %v378 = vld [vmem:[%s2 + $0x48] sm:$0xff]
    %v379 = vld [vmem:[%s2 + $0x50] sm:$0xff]
    %v380 = vld [vmem:[%s2 + $0x58] sm:$0xff]
    %v381 = vld [vmem:[%s2 + $0x60] sm:$0xff]
    %v382 = vld [vmem:[%s2 + $0x68] sm:$0xff]
    %v383 = vld [vmem:[%s2 + $0x70] sm:$0xff]
    %v384 = vld [vmem:[%s2 + $0x78] sm:$0xff]
    %v385 = vld [vmem:[%s2 + $0x80] sm:$0xff]
    %v386 = vld [vmem:[%s2 + $0x88] sm:$0xff]
    %v387 = vld [vmem:[%s2 + $0x90] sm:$0xff]
    %v388 = vld [vmem:[%s2 + $0x98] sm:$0xff]
    %v389 = vld [vmem:[%s2 + $0xa0] sm:$0xff]
    %v390 = vld [vmem:[%s2 + $0xa8] sm:$0xff]
    %v391 = vld [vmem:[%s2 + $0xb0] sm:$0xff]
    %v392 = vld [vmem:[%s2 + $0xb8] sm:$0xff]
    %v393 = vld [vmem:[%s2 + $0xc0] sm:$0xff]
    %v394 = vld [vmem:[%s2 + $0xc8] sm:$0xff]
    %v395 = vld [vmem:[%s2 + $0xd0] sm:$0xff]
    %v396 = vld [vmem:[%s2 + $0xd8] sm:$0xff]
    %v397 = vld [vmem:[%s2 + $0xe0] sm:$0xff]
    %v398 = vld [vmem:[%s2 + $0xe8] sm:$0xff]
    %v399 = vld [vmem:[%s2 + $0xf0] sm:$0xff]
    %v400 = vld [vmem:[%s2 + $0xf8] sm:$0xff]
    %v401 = vld [vmem:[%s2 + $0x100] sm:$0xff]
    %v402 = vld [vmem:[%s2 + $0x108] sm:$0xff]
    %v403 = vld [vmem:[%s2 + $0x110] sm:$0xff]
    %v404 = vld [vmem:[%s2 + $0x118] sm:$0xff]
    %v405 = vld [vmem:[%s2 + $0x120] sm:$0xff]
    %v406 = vld [vmem:[%s2 + $0x128] sm:$0xff]
    %v407 = vld [vmem:[%s2 + $0x130] sm:$0xff]
    %v408 = vld [vmem:[%s2 + $0x138] sm:$0xff]
    %v409 = vld [vmem:[%s2 + $0x140] sm:$0xff]
    %v410 = vld [vmem:[%s2 + $0x148] sm:$0xff]
    %v411 = vld [vmem:[%s2 + $0x150] sm:$0xff]
    %v412 = vld [vmem:[%s2 + $0x158] sm:$0xff]
    %v413 = vld [vmem:[%s2 + $0x160] sm:$0xff]
    %v414 = vld [vmem:[%s2 + $0x168] sm:$0xff]
    %v415 = vld [vmem:[%s2 + $0x170] sm:$0xff]
    %v416 = vld [vmem:[%s2 + $0x178] sm:$0xff]
    %v417 = vld [vmem:[%s2 + $0x180] sm:$0xff]
    %v418 = vld [vmem:[%s2 + $0x188] sm:$0xff]
    %v419 = vld [vmem:[%s2 + $0x190] sm:$0xff]
    %v420 = vld [vmem:[%s2 + $0x198] sm:$0xff]
    %v421 = vld [vmem:[%s2 + $0x1a0] sm:$0xff]
    %v422 = vld [vmem:[%s2 + $0x1a8] sm:$0xff]
    %v423 = vld [vmem:[%s2 + $0x1b0] sm:$0xff]
    %v424 = vld [vmem:[%s2 + $0x1b8] sm:$0xff]
    %v425 = vld [vmem:[%s2 + $0x1c0] sm:$0xff]
    %v426 = vld [vmem:[%s2 + $0x1c8] sm:$0xff]
    %v427 = vld [vmem:[%s2 + $0x1d0] sm:$0xff]
    %v428 = vld [vmem:[%s2 + $0x1d8] sm:$0xff]
    %v429 = vld [vmem:[%s2 + $0x1e0] sm:$0xff]
    %v430 = vld [vmem:[%s2 + $0x1e8] sm:$0xff]
    %v431 = vld [vmem:[%s2 + $0x1f0] sm:$0xff]
    %v432 = vld [vmem:[%s2 + $0x1f8] sm:$0xff]
    %v433 = vld [vmem:[%s2 + $0x200] sm:$0xff]
    %v434 = vld [vmem:[%s2 + $0x208] sm:$0xff]
    %v435 = vld [vmem:[%s2 + $0x210] sm:$0xff]
    %v436 = vld [vmem:[%s2 + $0x218] sm:$0xff]
    %v437 = vld [vmem:[%s2 + $0x220] sm:$0xff]
    %v438 = vld [vmem:[%s2 + $0x228] sm:$0xff]
    %v439 = vld [vmem:[%s2 + $0x230] sm:$0xff]
    %v440 = vld [vmem:[%s2 + $0x238] sm:$0xff]
    %v441 = vld [vmem:[%s2 + $0x240] sm:$0xff]
    %v442 = vld [vmem:[%s2 + $0x248] sm:$0xff]
    %v443 = vld [vmem:[%s2 + $0x250] sm:$0xff]
    %v444 = vld [vmem:[%s2 + $0x258] sm:$0xff]
    %v445 = vld [vmem:[%s2 + $0x260] sm:$0xff]
    %v446 = vld [vmem:[%s2 + $0x268] sm:$0xff]
    %v447 = vld [vmem:[%s2 + $0x270] sm:$0xff]
    %v448 = vld [vmem:[%s2 + $0x278] sm:$0xff]
    %v449 = vld [vmem:[%s2 + $0x280] sm:$0xff]
    %v450 = vld [vmem:[%s2 + $0x288] sm:$0xff]
    %v451 = vld [vmem:[%s2 + $0x290] sm:$0xff]
    %v452 = vld [vmem:[%s2 + $0x298] sm:$0xff]
    %v453 = vld [vmem:[%s2 + $0x2a0] sm:$0xff]
    %v454 = vld [vmem:[%s2 + $0x2a8] sm:$0xff]
    %v455 = vld [vmem:[%s2 + $0x2b0] sm:$0xff]
    %v456 = vld [vmem:[%s2 + $0x2b8] sm:$0xff]
    %v457 = vld [vmem:[%s2 + $0x2c0] sm:$0xff]
    %v458 = vld [vmem:[%s2 + $0x2c8] sm:$0xff]
    %v459 = vld [vmem:[%s2 + $0x2d0] sm:$0xff]
    %v460 = vld [vmem:[%s2 + $0x2d8] sm:$0xff]
    %v461 = vld [vmem:[%s2 + $0x2e0] sm:$0xff]
    %v462 = vld [vmem:[%s2 + $0x2e8] sm:$0xff]
    %v463 = vld [vmem:[%s2 + $0x2f0] sm:$0xff]
    %v464 = vld [vmem:[%s2 + $0x2f8] sm:$0xff]
    %v465 = vld [vmem:[%s2 + $0x300] sm:$0xff]
    %v466 = vld [vmem:[%s2 + $0x308] sm:$0xff]
    %v467 = vld [vmem:[%s2 + $0x310] sm:$0xff]
    %v468 = vld [vmem:[%s2 + $0x318] sm:$0xff]
    %v469 = vld [vmem:[%s2 + $0x320] sm:$0xff]
    %v470 = vld [vmem:[%s2 + $0x328] sm:$0xff]
    %v471 = vld [vmem:[%s2 + $0x330] sm:$0xff]
    %v472 = vld [vmem:[%s2 + $0x338] sm:$0xff]
    %v473 = vld [vmem:[%s2 + $0x340] sm:$0xff]
    %v474 = vld [vmem:[%s2 + $0x348] sm:$0xff]
    %v475 = vld [vmem:[%s2 + $0x350] sm:$0xff]
    %v476 = vld [vmem:[%s2 + $0x358] sm:$0xff]
    %v477 = vld [vmem:[%s2 + $0x360] sm:$0xff]
    %v478 = vld [vmem:[%s2 + $0x368] sm:$0xff]
    %v479 = vld [vmem:[%s2 + $0x370] sm:$0xff]
    %v480 = vld [vmem:[%s2 + $0x378] sm:$0xff]
    %v481 = vld [vmem:[%s2 + $0x380] sm:$0xff]
    %v482 = vld [vmem:[%s2 + $0x388] sm:$0xff]
    %v483 = vld [vmem:[%s2 + $0x390] sm:$0xff]
    %v484 = vld [vmem:[%s2 + $0x398] sm:$0xff]
    %v485 = vld [vmem:[%s2 + $0x3a0] sm:$0xff]
    %v486 = vld [vmem:[%s2 + $0x3a8] sm:$0xff]
    %v487 = vld [vmem:[%s2 + $0x3b0] sm:$0xff]
    %v488 = vld [vmem:[%s2 + $0x3b8] sm:$0xff]
    %v489 = vld [vmem:[%s2 + $0x3c0] sm:$0xff]
    %v490 = vld [vmem:[%s2 + $0x3c8] sm:$0xff]
    %v491 = vld [vmem:[%s2 + $0x3d0] sm:$0xff]
    %v492 = vld [vmem:[%s2 + $0x3d8] sm:$0xff]
    %v493 = vld [vmem:[%s2 + $0x3e0] sm:$0xff]
    %v494 = vld [vmem:[%s2 + $0x3e8] sm:$0xff]
    %v495 = vld [vmem:[%s2 + $0x3f0] sm:$0xff]
    %v496 = vld [vmem:[%s2 + $0x3f8] sm:$0xff]
    %497 = vmatprep.subr.mxu0 0.0
    %498 = vmatpush1.msra.mxu0 %v384
    %499 = vmatprep.subr.mxu0 0.0
    %500 = vmatpush1.msra.mxu0 %v383
    %501 = vmatprep.subr.mxu0 0.0
    %502 = vmatpush1.msra.mxu0 %v382
    %503 = vmatprep.subr.mxu0 0.0
    %504 = vmatpush1.msra.mxu0 %v381
    %505 = vmatprep.subr.mxu0 0.0
    %506 = vmatpush1.msra.mxu0 %v380
    %507 = vmatprep.subr.mxu0 0.0
    %508 = vmatpush1.msra.mxu0 %v379
    %509 = vmatprep.subr.mxu0 0.0
    %510 = vmatpush1.msra.mxu0 %v378
    %511 = vmatprep.subr.mxu0 0.0
    %512 = vmatpush1.msra.mxu0 %v377
    %513 = vmatprep.subr.mxu0 0.0
    %514 = vmatpush1.msra.mxu0 %v376
    %515 = vmatprep.subr.mxu0 0.0
    %516 = vmatpush1.msra.mxu0 %v375
    %517 = vmatprep.subr.mxu0 0.0
    %518 = vmatpush1.msra.mxu0 %v374
    %519 = vmatprep.subr.mxu0 0.0
    %520 = vmatpush1.msra.mxu0 %v373
    %521 = vmatprep.subr.mxu0 0.0
    %522 = vmatpush1.msra.mxu0 %v372
    %523 = vmatprep.subr.mxu0 0.0
    %524 = vmatpush1.msra.mxu0 %v371
    %525 = vmatprep.subr.mxu0 0.0
    %526 = vmatpush1.msra.mxu0 %v370
    %527 = vmatprep.subr.mxu0 0.0
    %528 = vmatpush1.msra.mxu0 %v369
    %529 = vmatprep.subr.mxu0 0.0
    %530 = vmatpush2.msra.mxu0 %v400
    %531 = vmatprep.subr.mxu0 0.0
    %532 = vmatpush2.msra.mxu0 %v399
    %533 = vmatprep.subr.mxu0 0.0
    %534 = vmatpush2.msra.mxu0 %v398
    %535 = vmatprep.subr.mxu0 0.0
    %536 = vmatpush2.msra.mxu0 %v397
    %537 = vmatprep.subr.mxu0 0.0
    %538 = vmatpush2.msra.mxu0 %v396
    %539 = vmatprep.subr.mxu0 0.0
    %540 = vmatpush2.msra.mxu0 %v395
    %541 = vmatprep.subr.mxu0 0.0
    %542 = vmatpush2.msra.mxu0 %v394
    %543 = vmatprep.subr.mxu0 0.0
    %544 = vmatpush2.msra.mxu0 %v393
    %545 = vmatprep.subr.mxu0 0.0
    %546 = vmatpush2.msra.mxu0 %v392
    %547 = vmatprep.subr.mxu0 0.0
    %548 = vmatpush2.msra.mxu0 %v391
    %549 = vmatprep.subr.mxu0 0.0
    %550 = vmatpush2.msra.mxu0 %v390
    %551 = vmatprep.subr.mxu0 0.0
    %552 = vmatpush2.msra.mxu0 %v389
    %553 = vmatprep.subr.mxu0 0.0
    %554 = vmatpush2.msra.mxu0 %v388
    %555 = vmatprep.subr.mxu0 0.0
    %556 = vmatpush2.msra.mxu0 %v387
    %557 = vmatprep.subr.mxu0 0.0
    %558 = vmatpush2.msra.mxu0 %v386
    %559 = vmatprep.subr.mxu0 0.0
    %560 = vmatpush2.msra.mxu0 %v385
    %561 = vmatprep.mubr.f32.mxu0 %v154
    %562 = vmatmul.mubr.f32.gmra.mxu0 %v152
    %v563 = vpop.f32.mrf.mxu0
    %v564 = vadd.f32 0.0, %v563
    %v565 = vpop.f32.mrf.mxu0
    %566 = vdwg.mxu0
    %567 = vmatprep.subr.mxu0 0.0
    %568 = vmatpush1.msra.mxu0 %v416
    %569 = vmatprep.subr.mxu0 0.0
    %570 = vmatpush1.msra.mxu0 %v415
    %571 = vmatprep.subr.mxu0 0.0
    %572 = vmatpush1.msra.mxu0 %v414
    %573 = vmatprep.subr.mxu0 0.0
    %574 = vmatpush1.msra.mxu0 %v413
    %575 = vmatprep.subr.mxu0 0.0
    %576 = vmatpush1.msra.mxu0 %v412
    %577 = vmatprep.subr.mxu0 0.0
    %578 = vmatpush1.msra.mxu0 %v411
    %579 = vmatprep.subr.mxu0 0.0
    %580 = vmatpush1.msra.mxu0 %v410
    %581 = vmatprep.subr.mxu0 0.0
    %582 = vmatpush1.msra.mxu0 %v409
    %583 = vmatprep.subr.mxu0 0.0
    %584 = vmatpush1.msra.mxu0 %v408
    %585 = vmatprep.subr.mxu0 0.0
    %586 = vmatpush1.msra.mxu0 %v407
    %587 = vmatprep.subr.mxu0 0.0
    %588 = vmatpush1.msra.mxu0 %v406
    %589 = vmatprep.subr.mxu0 0.0
    %590 = vmatpush1.msra.mxu0 %v405
    %591 = vmatprep.subr.mxu0 0.0
    %592 = vmatpush1.msra.mxu0 %v404
    %593 = vmatprep.subr.mxu0 0.0
    %594 = vmatpush1.msra.mxu0 %v403
    %595 = vmatprep.subr.mxu0 0.0
    %596 = vmatpush1.msra.mxu0 %v402
    %597 = vmatprep.subr.mxu0 0.0
    %598 = vmatpush1.msra.mxu0 %v401
    %599 = vmatprep.subr.mxu0 0.0
    %600 = vmatpush2.msra.mxu0 %v432
    %601 = vmatprep.subr.mxu0 0.0
    %602 = vmatpush2.msra.mxu0 %v431
    %603 = vmatprep.subr.mxu0 0.0
    %604 = vmatpush2.msra.mxu0 %v430
    %605 = vmatprep.subr.mxu0 0.0
    %606 = vmatpush2.msra.mxu0 %v429
    %607 = vmatprep.subr.mxu0 0.0
    %608 = vmatpush2.msra.mxu0 %v428
    %609 = vmatprep.subr.mxu0 0.0
    %610 = vmatpush2.msra.mxu0 %v427
    %611 = vmatprep.subr.mxu0 0.0
    %612 = vmatpush2.msra.mxu0 %v426
    %613 = vmatprep.subr.mxu0 0.0
    %614 = vmatpush2.msra.mxu0 %v425
    %615 = vmatprep.subr.mxu0 0.0
    %616 = vmatpush2.msra.mxu0 %v424
    %617 = vmatprep.subr.mxu0 0.0
    %618 = vmatpush2.msra.mxu0 %v423
    %619 = vmatprep.subr.mxu0 0.0
    %620 = vmatpush2.msra.mxu0 %v422
    %621 = vmatprep.subr.mxu0 0.0
    %622 = vmatpush2.msra.mxu0 %v421
    %623 = vmatprep.subr.mxu0 0.0
    %624 = vmatpush2.msra.mxu0 %v420
    %625 = vmatprep.subr.mxu0 0.0
    %626 = vmatpush2.msra.mxu0 %v419
    %627 = vmatprep.subr.mxu0 0.0
    %628 = vmatpush2.msra.mxu0 %v418
    %629 = vmatprep.subr.mxu0 0.0
    %630 = vmatpush2.msra.mxu0 %v417
    %631 = vmatprep.mubr.f32.mxu0 %v225
    %632 = vmatmul.mubr.f32.gmra.mxu0 %v223
    %v633 = vpop.f32.mrf.mxu0
    %v634 = vadd.f32 %v564, %v633
    %v635 = vpop.f32.mrf.mxu0
    %636 = vdwg.mxu0
    %637 = vmatprep.subr.mxu0 0.0
    %638 = vmatpush1.msra.mxu0 %v448
    %639 = vmatprep.subr.mxu0 0.0
    %640 = vmatpush1.msra.mxu0 %v447
    %641 = vmatprep.subr.mxu0 0.0
    %642 = vmatpush1.msra.mxu0 %v446
    %643 = vmatprep.subr.mxu0 0.0
    %644 = vmatpush1.msra.mxu0 %v445
    %645 = vmatprep.subr.mxu0 0.0
    %646 = vmatpush1.msra.mxu0 %v444
    %647 = vmatprep.subr.mxu0 0.0
    %648 = vmatpush1.msra.mxu0 %v443
    %649 = vmatprep.subr.mxu0 0.0
    %650 = vmatpush1.msra.mxu0 %v442
    %651 = vmatprep.subr.mxu0 0.0
    %652 = vmatpush1.msra.mxu0 %v441
    %653 = vmatprep.subr.mxu0 0.0
    %654 = vmatpush1.msra.mxu0 %v440
    %655 = vmatprep.subr.mxu0 0.0
    %656 = vmatpush1.msra.mxu0 %v439
    %657 = vmatprep.subr.mxu0 0.0
    %658 = vmatpush1.msra.mxu0 %v438
    %659 = vmatprep.subr.mxu0 0.0
    %660 = vmatpush1.msra.mxu0 %v437
    %661 = vmatprep.subr.mxu0 0.0
    %662 = vmatpush1.msra.mxu0 %v436
    %663 = vmatprep.subr.mxu0 0.0
    %664 = vmatpush1.msra.mxu0 %v435
    %665 = vmatprep.subr.mxu0 0.0
    %666 = vmatpush1.msra.mxu0 %v434
    %667 = vmatprep.subr.mxu0 0.0
    %668 = vmatpush1.msra.mxu0 %v433
    %669 = vmatprep.subr.mxu0 0.0
    %670 = vmatpush2.msra.mxu0 %v464
    %671 = vmatprep.subr.mxu0 0.0
    %672 = vmatpush2.msra.mxu0 %v463
    %673 = vmatprep.subr.mxu0 0.0
    %674 = vmatpush2.msra.mxu0 %v462
    %675 = vmatprep.subr.mxu0 0.0
    %676 = vmatpush2.msra.mxu0 %v461
    %677 = vmatprep.subr.mxu0 0.0
    %678 = vmatpush2.msra.mxu0 %v460
    %679 = vmatprep.subr.mxu0 0.0
    %680 = vmatpush2.msra.mxu0 %v459
    %681 = vmatprep.subr.mxu0 0.0
    %682 = vmatpush2.msra.mxu0 %v458
    %683 = vmatprep.subr.mxu0 0.0
    %684 = vmatpush2.msra.mxu0 %v457
    %685 = vmatprep.subr.mxu0 0.0
    %686 = vmatpush2.msra.mxu0 %v456
    %687 = vmatprep.subr.mxu0 0.0
    %688 = vmatpush2.msra.mxu0 %v455
    %689 = vmatprep.subr.mxu0 0.0
    %690 = vmatpush2.msra.mxu0 %v454
    %691 = vmatprep.subr.mxu0 0.0
    %692 = vmatpush2.msra.mxu0 %v453
    %693 = vmatprep.subr.mxu0 0.0
    %694 = vmatpush2.msra.mxu0 %v452
    %695 = vmatprep.subr.mxu0 0.0
    %696 = vmatpush2.msra.mxu0 %v451
    %697 = vmatprep.subr.mxu0 0.0
    %698 = vmatpush2.msra.mxu0 %v450
    %699 = vmatprep.subr.mxu0 0.0
    %700 = vmatpush2.msra.mxu0 %v449
    %701 = vmatprep.mubr.f32.mxu0 %v296
    %702 = vmatmul.mubr.f32.gmra.mxu0 %v294
    %v703 = vpop.f32.mrf.mxu0
    %v704 = vadd.f32 %v634, %v703
    %v705 = vpop.f32.mrf.mxu0
    %706 = vdwg.mxu0
    %707 = vmatprep.subr.mxu0 0.0
    %708 = vmatpush1.msra.mxu0 %v480
    %709 = vmatprep.subr.mxu0 0.0
    %710 = vmatpush1.msra.mxu0 %v479
    %711 = vmatprep.subr.mxu0 0.0
    %712 = vmatpush1.msra.mxu0 %v478
    %713 = vmatprep.subr.mxu0 0.0
    %714 = vmatpush1.msra.mxu0 %v477
    %715 = vmatprep.subr.mxu0 0.0
    %716 = vmatpush1.msra.mxu0 %v476
    %717 = vmatprep.subr.mxu0 0.0
    %718 = vmatpush1.msra.mxu0 %v475
    %719 = vmatprep.subr.mxu0 0.0
    %720 = vmatpush1.msra.mxu0 %v474
    %721 = vmatprep.subr.mxu0 0.0
    %722 = vmatpush1.msra.mxu0 %v473
    %723 = vmatprep.subr.mxu0 0.0
    %724 = vmatpush1.msra.mxu0 %v472
    %725 = vmatprep.subr.mxu0 0.0
    %726 = vmatpush1.msra.mxu0 %v471
    %727 = vmatprep.subr.mxu0 0.0
    %728 = vmatpush1.msra.mxu0 %v470
    %729 = vmatprep.subr.mxu0 0.0
    %730 = vmatpush1.msra.mxu0 %v469
    %731 = vmatprep.subr.mxu0 0.0
    %732 = vmatpush1.msra.mxu0 %v468
    %733 = vmatprep.subr.mxu0 0.0
    %734 = vmatpush1.msra.mxu0 %v467
    %735 = vmatprep.subr.mxu0 0.0
    %736 = vmatpush1.msra.mxu0 %v466
    %737 = vmatprep.subr.mxu0 0.0
    %738 = vmatpush1.msra.mxu0 %v465
    %739 = vmatprep.subr.mxu0 0.0
    %740 = vmatpush2.msra.mxu0 %v496
    %741 = vmatprep.subr.mxu0 0.0
    %742 = vmatpush2.msra.mxu0 %v495
    %743 = vmatprep.subr.mxu0 0.0
    %744 = vmatpush2.msra.mxu0 %v494
    %745 = vmatprep.subr.mxu0 0.0
    %746 = vmatpush2.msra.mxu0 %v493
    %747 = vmatprep.subr.mxu0 0.0
    %748 = vmatpush2.msra.mxu0 %v492
    %749 = vmatprep.subr.mxu0 0.0
    %750 = vmatpush2.msra.mxu0 %v491
    %751 = vmatprep.subr.mxu0 0.0
    %752 = vmatpush2.msra.mxu0 %v490
    %753 = vmatprep.subr.mxu0 0.0
    %754 = vmatpush2.msra.mxu0 %v489
    %755 = vmatprep.subr.mxu0 0.0
    %756 = vmatpush2.msra.mxu0 %v488
    %757 = vmatprep.subr.mxu0 0.0
    %758 = vmatpush2.msra.mxu0 %v487
    %759 = vmatprep.subr.mxu0 0.0
    %760 = vmatpush2.msra.mxu0 %v486
    %761 = vmatprep.subr.mxu0 0.0
    %762 = vmatpush2.msra.mxu0 %v485
    %763 = vmatprep.subr.mxu0 0.0
    %764 = vmatpush2.msra.mxu0 %v484
    %765 = vmatprep.subr.mxu0 0.0
    %766 = vmatpush2.msra.mxu0 %v483
    %767 = vmatprep.subr.mxu0 0.0
    %768 = vmatpush2.msra.mxu0 %v482
    %769 = vmatprep.subr.mxu0 0.0
    %770 = vmatpush2.msra.mxu0 %v481
    %771 = vmatprep.mubr.f32.mxu0 %v367
    %772 = vmatmul.mubr.f32.gmra.mxu0 %v365
    %v773 = vpop.f32.mrf.mxu0
    %v774 = vadd.f32 %v704, %v773
    %v775 = vpop.f32.mrf.mxu0
    %776 = vdwg.mxu0
    %v777 = vmax.f32 %v774, 0.0
    %v780 = vunpack.c.l.s4 1966171168
    %v781 = vunpack.c.0.s8 %v780
    %v782 = vlaneseq
    %v783 = vshrl.u32 %v782, 7
    %v784 = vsub.s32 %v781, %v783
    %v785 = vrot.slane %v777, %v784
    %v786 = vcombine.high %v785, %v785
    %v788 = vunpack.c.l.s4 1966171168
    %v789 = vunpack.c.0.s8 %v788
    %v790 = vlaneseq
    %v791 = vshrl.u32 %v790, 7
    %v792 = vsub.s32 %v789, %v791
    %v793 = vrot.slane %v785, %v792
    %v795 = vunpack.c.l.s4 1966171168
    %v796 = vunpack.c.0.s8 %v795
    %v797 = vlaneseq
    %v798 = vshrl.u32 %v797, 7
    %v799 = vsub.s32 %v796, %v798
    %v800 = vrot.slane %v786, %v799
    %vm803 = vcmask 24576
    %804 = vst.msk [vmem:[#allocation2] sm:$0x1] %vm803, %v793
    %805 = vst.msk [vmem:[#allocation2 + $0x1] sm:$0x1] %vm803, %v800
    %v806 = vlaneseq
    %v807 = vshrl.u32 %v806, 7
    %v808 = vsub.s32 0, %v807
    %v809 = vrot.slane %v777, %v808
    %811 = vbcast.lane.b32.xlu0 %v809, 256
    %v812 = vpop.permute.xlu0 %811
    %v813 = vlaneseq
    %v814 = vshrl.u32 %v813, 7
    %v815 = vsub.s32 1, %v814
    %v816 = vrot.slane %v777, %v815
    %818 = vbcast.lane.b32.xlu0 %v816, 256
    %v819 = vpop.permute.xlu0 %818
    %v823 = vunpack.c.l.s4 839922192
    %v824 = vunpack.c.0.s8 %v823
    %v825 = vlaneseq
    %v826 = vshrl.u32 %v825, 7
    %v827 = vsub.s32 %v824, %v826
    %v828 = vrot.slane %v812, %v827
    %v830 = vunpack.c.l.s4 839922192
    %v831 = vunpack.c.0.s8 %v830
    %v832 = vlaneseq
    %v833 = vshrl.u32 %v832, 7
    %v834 = vsub.s32 %v831, %v833
    %v835 = vrot.slane %v819, %v834
    %v838 = vmul.f32 %v18, %v828
    %v839 = vmul.f32 %v19, %v835
    %840 = vst [vmem:[#allocation4] sm:$0xff] %v838
    %841 = vst [vmem:[#allocation4 + $0x8] sm:$0xff] %v839
    // Predicated region
    $region14: #{tpu_custom_call.1} parent=1 // pred_check
      _
    $region15: #{tpu_custom_call.1} parent=1 // pred_check_branch
      %843 = sbr.rel (0) target = $region17
    $region16: #{tpu_custom_call.1} parent=1 // pred_region
      %s845 = ssub.s32 32, 32
      %846 = vsyncadd [#allocation3], %s845
      %s847 = sshll.u32 [#allocation2], 4
      %s848 = int_to_ptr.vmem [resolvable:$true] %s847
      %853 = dma.vmem_to_hbm [thread:$0]  %s848, 32, %s3, [#allocation3], 16, 16, 1
    $region17: #{tpu_custom_call.1} parent=1 // pred_fallthru
      _
    // Predicated region
    $region18: #{tpu_custom_call.1} parent=1 // pred_check
      _
    $region19: #{tpu_custom_call.1} parent=1 // pred_check_branch
      %855 = sbr.rel (0) target = $region21
    $region20: #{tpu_custom_call.1} parent=1 // pred_region
      %s857 = ssub.s32 256, 256
      %858 = vsyncadd [#allocation5], %s857
      %s859 = sshll.u32 [#allocation4], 4
      %s860 = int_to_ptr.vmem [resolvable:$true] %s859
      %865 = dma.vmem_to_hbm [thread:$0]  %s860, 256, %s4, [#allocation5], 128, 128, 8
    $region21: #{tpu_custom_call.1} parent=1 // pred_fallthru
      _
    // Predicated region
    $region22: #{tpu_custom_call.1} parent=1 // pred_check
      _
    $region23: #{tpu_custom_call.1} parent=1 // pred_check_branch
      %867 = sbr.rel (0) target = $region25
    $region24: #{tpu_custom_call.1} parent=1 // pred_region
      %868 = dma.done [#allocation3], 32
    $region25: #{tpu_custom_call.1} parent=1 // pred_fallthru
      _
    // Predicated region
    $region26: #{tpu_custom_call.1} parent=1 // pred_check
      _
    $region27: #{tpu_custom_call.1} parent=1 // pred_check_branch
      %870 = sbr.rel (0) target = $region29
    $region28: #{tpu_custom_call.1} parent=1 // pred_region
      %871 = dma.done [#allocation5], 256
    $region29: #{tpu_custom_call.1} parent=1 // pred_fallthru
      _
    %872 = vsyncpa [#allocation3], 1
    %873 = vsyncpa [#allocation5], 1

</llo_original>
